<compile_context>
chip_gen: v6e
topology: v6e:2x2x1
jax: 0.10.0
libtpu: 0.0.40
codegen_flags: <defaults>
</compile_context>

<pallas_src>
import functools

import jax
import jax.numpy as jnp
from jax import lax
from jax.experimental import pallas as pl
from jax.experimental.pallas import tpu as pltpu

_NEG_INF = -1e30


def _flash_attn_kernel(q_ref, k_ref, v_ref, o_ref, m_sc, l_sc, acc_sc, *,
                       softmax_scale, causal, kv_len, mask_kv_pad):
    """One (batch, kv_head, q-tile, kv-tile) step of online-softmax attention.

    q_ref:  (1, rep, block_q, d)   -- all query heads of the kv-head group
    k_ref:  (1, 1, block_k, d)
    v_ref:  (1, 1, block_k, d)
    o_ref:  (1, rep, block_q, d)
    """
    q_idx = pl.program_id(2)
    kv_idx = pl.program_id(3)
    _, rep, block_q, d = q_ref.shape
    block_k = k_ref.shape[2]
    m_rows = rep * block_q

    @pl.when(kv_idx == 0)
    def _init():
        m_sc[...] = jnp.full_like(m_sc, _NEG_INF)
        l_sc[...] = jnp.zeros_like(l_sc)
        acc_sc[...] = jnp.zeros_like(acc_sc)

    def _accumulate(apply_causal_mask):
        in_dtype = q_ref.dtype
        # Scale Q (f32) once per loaded tile, then cast back so the MXU sees the
        # native (e.g. bf16) dtype.  Reshapes below merge/split the leading dim
        # in f32 (block_q is a multiple of 8 -> free relabeling, no relayout).
        q = q_ref[0].astype(jnp.float32) * softmax_scale     # (rep, block_q, d)
        q = q.reshape(m_rows, d).astype(in_dtype)            # (rep*block_q, d)
        k = k_ref[0, 0]                                       # (block_k, d)
        v = v_ref[0, 0]                                       # (block_k, d)

        # QK^T with contraction on the last dim of both operands (native
        # trans_b MXU feed, no transpose through the XLU).
        s = lax.dot_general(
            q, k,
            dimension_numbers=(((1,), (1,)), ((), ())),
            preferred_element_type=jnp.float32)               # (m_rows, block_k)

        if apply_causal_mask or mask_kv_pad:
            span_k = kv_idx * block_k + lax.broadcasted_iota(
                jnp.int32, (block_q, block_k), 1)
            mask = None
            if apply_causal_mask:
                span_q = q_idx * block_q + lax.broadcasted_iota(
                    jnp.int32, (block_q, block_k), 0)
                mask = span_q >= span_k
            if mask_kv_pad:
                kv_ok = span_k < kv_len
                mask = kv_ok if mask is None else jnp.logical_and(mask, kv_ok)
            s3 = s.reshape(rep, block_q, block_k)
            s = jnp.where(mask[None], s3, _NEG_INF).reshape(m_rows, block_k)

        m_prev = m_sc[...]
        m_new = jnp.maximum(m_prev, s.max(axis=-1, keepdims=True))
        alpha = jnp.exp(m_prev - m_new)
        p = jnp.exp(s - m_new)          # f32; masked lanes underflow to 0

        l_sc[...] = alpha * l_sc[...] + p.sum(axis=-1, keepdims=True)
        acc_sc[...] = alpha * acc_sc[...] + jnp.dot(
            p.astype(v.dtype), v, preferred_element_type=jnp.float32)
        m_sc[...] = m_new

    if causal:
        q_first = q_idx * block_q
        q_last = q_first + block_q - 1
        kv_first = kv_idx * block_k
        kv_last = kv_first + block_k - 1
        tile_runs = kv_first <= q_last           # skip fully-masked kv tiles
        needs_mask = kv_last > q_first           # mask only diagonal-crossing tiles

        @pl.when(jnp.logical_and(tile_runs, needs_mask))
        def _masked():
            _accumulate(apply_causal_mask=True)

        @pl.when(jnp.logical_and(tile_runs, jnp.logical_not(needs_mask)))
        def _unmasked():
            _accumulate(apply_causal_mask=False)
    else:
        _accumulate(apply_causal_mask=False)

    @pl.when(kv_idx == pl.num_programs(3) - 1)
    def _finalize():
        inv_l = pl.reciprocal(l_sc[...], approx=True)         # EUP, not VPU divide
        out = (acc_sc[...] * inv_l).reshape(rep, block_q, d)
        o_ref[0] = out.astype(o_ref.dtype)


def _flash_attention_bhsd(q, k, v, *, softmax_scale, causal, block_q, block_k,
                          kv_len):
    """q: [B, H, Sq, D], k/v: [B, Hkv, Sk, D] -> [B, H, Sq, D].  Sq/Sk already
    padded to multiples of block_q/block_k; kv_len is the true sequence length."""
    b, h, s_q, d = q.shape
    _, hkv, s_k, _ = k.shape
    assert h % hkv == 0, "num_heads must be a multiple of num_kv_heads"
    rep = h // hkv
    assert s_q % block_q == 0 and s_k % block_k == 0
    mask_kv_pad = (s_k != kv_len)

    kernel = functools.partial(
        _flash_attn_kernel,
        softmax_scale=softmax_scale,
        causal=causal,
        kv_len=kv_len,
        mask_kv_pad=mask_kv_pad,
    )

    if causal:
        # Clamp the kv block index to the last causally-needed block: for
        # fully-masked kv tiles the block index repeats, so Pallas elides the
        # K/V DMA and the step only pays loop overhead.
        def kv_map(bi, hi, qi, ki):
            last_needed = (qi * block_q + block_q - 1) // block_k
            return (bi, hi, jnp.minimum(ki, last_needed), 0)
    else:
        def kv_map(bi, hi, qi, ki):
            return (bi, hi, ki, 0)

    def q_map(bi, hi, qi, ki):
        # Head-axis block size is `rep`, so block index hi selects the whole
        # query-head group that shares kv head hi (no HBM repeat for GQA).
        return (bi, hi, qi, 0)

    grid = (b, hkv, s_q // block_q, s_k // block_k)
    return pl.pallas_call(
        kernel,
        out_shape=jax.ShapeDtypeStruct((b, h, s_q, d), q.dtype),
        grid_spec=pltpu.PrefetchScalarGridSpec(
            num_scalar_prefetch=0,
            grid=grid,
            in_specs=[
                pl.BlockSpec((1, rep, block_q, d), q_map),
                pl.BlockSpec((1, 1, block_k, d), kv_map),
                pl.BlockSpec((1, 1, block_k, d), kv_map),
            ],
            out_specs=pl.BlockSpec((1, rep, block_q, d), q_map),
            scratch_shapes=[
                pltpu.VMEM((rep * block_q, 1), jnp.float32),   # running max m
                pltpu.VMEM((rep * block_q, 1), jnp.float32),   # running denom l
                pltpu.VMEM((rep * block_q, d), jnp.float32),   # fp32 accumulator
            ],
        ),
        compiler_params=pltpu.CompilerParams(
            dimension_semantics=("parallel", "parallel", "parallel", "arbitrary"),
            # Working set at default tiles is only a few MiB; 32 MiB is the
            # scoped default on v6e/v7x and safe on every generation (never
            # request all 64 MiB of v7x physical VMEM).
            vmem_limit_bytes=32 * 1024 * 1024),
    )(q, k, v)


def _round_up(x: int, m: int) -> int:
    return ((x + m - 1) // m) * m


def _pick_block(requested: int, seq_len: int) -> int:
    """Sequence-axis tile: always a multiple of 8 (sublane-aligned) and no
    larger than the 8-rounded sequence length; ragged lengths are handled by
    padding in the wrapper (pad < one tile)."""
    s8 = _round_up(max(seq_len, 1), 8)
    blk = min((max(requested, 8) // 8) * 8, s8)
    return max(blk, 8)


class LocalAttention:
    """JAX/Pallas re-implementation of fastvideo LocalAttention.forward.

    forward(q, k, v) with q of shape [batch, seq, num_heads, head_dim] and
    k/v of shape [batch, seq, num_kv_heads, head_dim] returns
    softmax(q k^T * scale) v with the same shape/dtype as q.
    """

    def __init__(self, num_heads: int, head_size: int,
                 num_kv_heads: int | None = None,
                 softmax_scale: float | None = None,
                 causal: bool = False,
                 block_q: int = 256, block_k: int = 512):
        self.num_heads = num_heads
        self.head_size = head_size
        self.num_kv_heads = num_heads if num_kv_heads is None else num_kv_heads
        self.softmax_scale = head_size ** (-0.5) if softmax_scale is None else softmax_scale
        self.causal = causal
        self.block_q = block_q
        self.block_k = block_k

    def __call__(self, q, k, v):
        assert q.ndim == 4 and k.ndim == 4 and v.ndim == 4, "Expected 4D tensors"
        b, s, h, d = q.shape
        assert h == self.num_heads and d == self.head_size
        hkv = k.shape[2]
        assert hkv == self.num_kv_heads and v.shape[2] == hkv
        assert h % hkv == 0

        # BSHD -> BHSD (layout plumbing only; GQA is handled in the kernel by
        # folding the head group into the Q block, never by repeating K/V).
        # TODO(synk): keep activations in BHSD upstream / index BSHD directly
        # to remove these four HBM round trips.
        qt = jnp.transpose(q, (0, 2, 1, 3))   # [B, H,   S, D]
        kt = jnp.transpose(k, (0, 2, 1, 3))   # [B, Hkv, S, D]
        vt = jnp.transpose(v, (0, 2, 1, 3))   # [B, Hkv, S, D]

        bq = _pick_block(self.block_q, s)
        bk = _pick_block(self.block_k, s)

        s_q = _round_up(s, bq)
        s_k = _round_up(s, bk)
        if s_q != s:
            qt = jnp.pad(qt, ((0, 0), (0, 0), (0, s_q - s), (0, 0)))
        if s_k != s:
            kt = jnp.pad(kt, ((0, 0), (0, 0), (0, s_k - s), (0, 0)))
            vt = jnp.pad(vt, ((0, 0), (0, 0), (0, s_k - s), (0, 0)))

        out = _flash_attention_bhsd(
            qt, kt, vt,
            softmax_scale=self.softmax_scale, causal=self.causal,
            block_q=bq, block_k=bk, kv_len=s)

        if s_q != s:
            out = out[:, :, :s, :]
        # BHSD -> BSHD
        return jnp.transpose(out, (0, 2, 1, 3))


def _reference_attention(q, k, v, scale, causal):
    qf, kf, vf = (x.astype(jnp.float32) for x in (q, k, v))
    h, hkv = q.shape[2], k.shape[2]
    if hkv != h:
        rep = h // hkv
        kf = jnp.repeat(kf, rep, axis=2)
        vf = jnp.repeat(vf, rep, axis=2)
    s = jnp.einsum("bqhd,bkhd->bhqk", qf, kf) * scale
    if causal:
        S = q.shape[1]
        mask = jnp.tril(jnp.ones((S, S), dtype=bool))
        s = jnp.where(mask[None, None], s, -jnp.inf)
    p = jax.nn.softmax(s, axis=-1)
    o = jnp.einsum("bhqk,bkhd->bqhd", p, vf)
    return o.astype(q.dtype)


if __name__ == "__main__":
    key = jax.random.PRNGKey(0)
    dtype = jnp.bfloat16  # stands in for get_compute_dtype()

    def make(shape, k):
        return jax.random.normal(k, shape, dtype=jnp.float32).astype(dtype)

    def check(name, attn, q, k, v, tol=4e-2):
        out = jax.block_until_ready(attn(q, k, v))
        assert out.shape == q.shape and out.dtype == q.dtype, name
        ref = _reference_attention(q, k, v, attn.softmax_scale, attn.causal)
        err = float(jnp.max(jnp.abs(out.astype(jnp.float32) - ref.astype(jnp.float32))))
        assert err < tol, f"{name}: max abs error too large: {err}"

    # Small, deterministic shapes: batch=2, seq=128, heads=4, head_dim=32.
    B, S, H, D = 2, 128, 4, 32
    k0, k1, k2 = jax.random.split(key, 3)
    q = make((B, S, H, D), k0)
    k = make((B, S, H, D), k1)
    v = make((B, S, H, D), k2)

    # 1) Non-causal (default tiles clamp to the 128-long sequence).
    check("non-causal", LocalAttention(num_heads=H, head_size=D, causal=False), q, k, v)

    # 2) Causal with small tiles: exercises tile skipping + clamped K/V index_map.
    check("causal-tiled",
          LocalAttention(num_heads=H, head_size=D, causal=True, block_q=64, block_k=64),
          q, k, v)

    # 3) GQA (2 query heads per kv head), causal, multi-tile: exercises the
    #    folded head-group matmul sharing one K/V stream.
    Hkv = 2
    k3, k4 = jax.random.split(k2)
    kg = make((B, S, Hkv, D), k3)
    vg = make((B, S, Hkv, D), k4)
    check("gqa-causal",
          LocalAttention(num_heads=H, head_size=D, num_kv_heads=Hkv, causal=True,
                         block_q=64, block_k=64),
          q, kg, vg)

    # 4) Ragged sequence length (not a multiple of the tile): exercises padding
    #    plus the in-kernel kv-length mask, combined with GQA + causal.
    Sr = 100
    k5, k6, k7 = jax.random.split(k4, 3)
    qr = make((B, Sr, H, D), k5)
    kr = make((B, Sr, Hkv, D), k6)
    vr = make((B, Sr, Hkv, D), k7)
    check("gqa-causal-ragged",
          LocalAttention(num_heads=H, head_size=D, num_kv_heads=Hkv, causal=True,
                         block_q=32, block_k=32),
          qr, kr, vr)

    print("KERNEL_OK")
</pallas_src>

<mosaic_0001>
module attributes {stable_mosaic.version = 11 : i64} {
  func.func @_flash_attn_kernel(%arg0: i32, %arg1: i32, %arg2: i32, %arg3: i32, %arg4: memref<1x1x128x32xbf16, #tpu.memory_space<vmem>>, %arg5: memref<1x1x128x32xbf16, #tpu.memory_space<vmem>>, %arg6: memref<1x1x128x32xbf16, #tpu.memory_space<vmem>>, %arg7: memref<1x1x128x32xbf16, #tpu.memory_space<vmem>>, %arg8: memref<128x1xf32, #tpu.memory_space<vmem>>, %arg9: memref<128x1xf32, #tpu.memory_space<vmem>>, %arg10: memref<128x32xf32, #tpu.memory_space<vmem>>) attributes {dimension_semantics = [#tpu.dimension_semantics<parallel>, #tpu.dimension_semantics<parallel>, #tpu.dimension_semantics<parallel>, #tpu.dimension_semantics<arbitrary>], iteration_bounds = array<i64: 2, 4, 1, 1>, scalar_prefetch = 0 : i64, scratch_operands = 3 : i64, tpu.core_type = #tpu.core_type<tc>, window_params = [{transform_indices = @transform_0, window_bounds = array<i64: 1, 1, 128, 32>}, {transform_indices = @transform_1, window_bounds = array<i64: 1, 1, 128, 32>}, {transform_indices = @transform_2, window_bounds = array<i64: 1, 1, 128, 32>}, {transform_indices = @transform_3, window_bounds = array<i64: 1, 1, 128, 32>}]} {
    %c0_i32 = arith.constant 0 : i32
    %0 = arith.cmpi eq, %arg3, %c0_i32 : i32
    %1 = arith.extui %0 : i1 to i32
    %c0_i32_0 = arith.constant 0 : i32
    %2 = arith.cmpi ne, %1, %c0_i32_0 : i32
    scf.if %2 {
      %cst_30 = arith.constant -1.000000e+30 : f32
      %41 = vector.broadcast %cst_30 : f32 to vector<128x1xf32>
      %c0_31 = arith.constant 0 : index
      %c0_32 = arith.constant 0 : index
      %42 = vector.load %arg8[%c0_31, %c0_32] : memref<128x1xf32, #tpu.memory_space<vmem>>, vector<128x1xf32>
      tpu.vector_store %arg8[%c0_31, %c0_32], %41 {strides = array<i32>} : memref<128x1xf32, #tpu.memory_space<vmem>>, vector<128x1xf32>,
      %cst_33 = arith.constant 0.000000e+00 : f32
      %43 = vector.broadcast %cst_33 : f32 to vector<128x1xf32>
      %c0_34 = arith.constant 0 : index
      %c0_35 = arith.constant 0 : index
      %44 = vector.load %arg9[%c0_34, %c0_35] : memref<128x1xf32, #tpu.memory_space<vmem>>, vector<128x1xf32>
      tpu.vector_store %arg9[%c0_34, %c0_35], %43 {strides = array<i32>} : memref<128x1xf32, #tpu.memory_space<vmem>>, vector<128x1xf32>,
      %cst_36 = arith.constant 0.000000e+00 : f32
      %45 = vector.broadcast %cst_36 : f32 to vector<128x32xf32>
      %c0_37 = arith.constant 0 : index
      %c0_38 = arith.constant 0 : index
      %46 = vector.load %arg10[%c0_37, %c0_38] : memref<128x32xf32, #tpu.memory_space<vmem>>, vector<128x32xf32>
      tpu.vector_store %arg10[%c0_37, %c0_38], %45 {strides = array<i32>} : memref<128x32xf32, #tpu.memory_space<vmem>>, vector<128x32xf32>,
    } else {
    }
    %c0 = arith.constant 0 : index
    %c0_1 = arith.constant 0 : index
    %c0_2 = arith.constant 0 : index
    %c0_3 = arith.constant 0 : index
    %3 = vector.load %arg4[%c0, %c0_1, %c0_2, %c0_3] : memref<1x1x128x32xbf16, #tpu.memory_space<vmem>>, vector<1x1x128x32xbf16>
    %4 = vector.shape_cast %3 : vector<1x1x128x32xbf16> to vector<1x128x32xbf16>
    %5 = arith.extf %4 : vector<1x128x32xbf16> to vector<1x128x32xf32>
    %cst = arith.constant 0.176776692 : f32
    %6 = vector.broadcast %cst : f32 to vector<1x128x32xf32>
    %7 = arith.mulf %5, %6 : vector<1x128x32xf32>
    %8 = vector.shape_cast %7 : vector<1x128x32xf32> to vector<128x32xf32>
    %9 = arith.truncf %8 : vector<128x32xf32> to vector<128x32xbf16>
    %c0_4 = arith.constant 0 : index
    %c0_5 = arith.constant 0 : index
    %c0_6 = arith.constant 0 : index
    %c0_7 = arith.constant 0 : index
    %10 = vector.load %arg5[%c0_4, %c0_5, %c0_6, %c0_7] : memref<1x1x128x32xbf16, #tpu.memory_space<vmem>>, vector<1x1x128x32xbf16>
    %11 = vector.shape_cast %10 : vector<1x1x128x32xbf16> to vector<128x32xbf16>
    %c0_8 = arith.constant 0 : index
    %c0_9 = arith.constant 0 : index
    %c0_10 = arith.constant 0 : index
    %c0_11 = arith.constant 0 : index
    %12 = vector.load %arg6[%c0_8, %c0_9, %c0_10, %c0_11] : memref<1x1x128x32xbf16, #tpu.memory_space<vmem>>, vector<1x1x128x32xbf16>
    %13 = vector.shape_cast %12 : vector<1x1x128x32xbf16> to vector<128x32xbf16>
    %cst_12 = arith.constant dense<0.000000e+00> : vector<128x128xf32>
    %14 = tpu.matmul %9, %11, %cst_12 {dimension_numbers = #tpu.dot_dimension_numbers<[1], [1], [0], [0], [0, 0, 1, 0], [], []>} : vector<128x32xbf16>, vector<128x32xbf16>, vector<128x128xf32> -> vector<128x128xf32>
    %c0_13 = arith.constant 0 : index
    %c0_14 = arith.constant 0 : index
    %15 = vector.load %arg8[%c0_13, %c0_14] : memref<128x1xf32, #tpu.memory_space<vmem>>, vector<128x1xf32>
    %cst_15 = arith.constant dense<0xFF800000> : vector<128xf32>
    %16 = vector.multi_reduction <maximumf>, %14, %cst_15 [1] : vector<128x128xf32> to vector<128xf32>
    %17 = vector.shape_cast %16 : vector<128xf32> to vector<128x1xf32>
    %18 = arith.maximumf %15, %17 : vector<128x1xf32>
    %19 = arith.subf %15, %18 : vector<128x1xf32>
    %20 = math.exp %19 : vector<128x1xf32>
    %21 = vector.broadcast %18 : vector<128x1xf32> to vector<128x128xf32>
    %22 = arith.subf %14, %21 : vector<128x128xf32>
    %23 = math.exp %22 : vector<128x128xf32>
    %c0_16 = arith.constant 0 : index
    %c0_17 = arith.constant 0 : index
    %24 = vector.load %arg9[%c0_16, %c0_17] : memref<128x1xf32, #tpu.memory_space<vmem>>, vector<128x1xf32>
    %25 = arith.mulf %20, %24 : vector<128x1xf32>
    %cst_18 = arith.constant dense<0.000000e+00> : vector<128xf32>
    %26 = vector.multi_reduction <add>, %23, %cst_18 [1] : vector<128x128xf32> to vector<128xf32>
    %27 = vector.shape_cast %26 : vector<128xf32> to vector<128x1xf32>
    %28 = arith.addf %25, %27 : vector<128x1xf32>
    %c0_19 = arith.constant 0 : index
    %c0_20 = arith.constant 0 : index
    %29 = vector.load %arg9[%c0_19, %c0_20] : memref<128x1xf32, #tpu.memory_space<vmem>>, vector<128x1xf32>
    tpu.vector_store %arg9[%c0_19, %c0_20], %28 {strides = array<i32>} : memref<128x1xf32, #tpu.memory_space<vmem>>, vector<128x1xf32>,
    %c0_21 = arith.constant 0 : index
    %c0_22 = arith.constant 0 : index
    %30 = vector.load %arg10[%c0_21, %c0_22] : memref<128x32xf32, #tpu.memory_space<vmem>>, vector<128x32xf32>
    %31 = vector.broadcast %20 : vector<128x1xf32> to vector<128x32xf32>
    %32 = arith.mulf %31, %30 : vector<128x32xf32>
    %33 = arith.truncf %23 : vector<128x128xf32> to vector<128x128xbf16>
    %cst_23 = arith.constant dense<0.000000e+00> : vector<128x32xf32>
    %34 = tpu.matmul %33, %13, %cst_23 {dimension_numbers = #tpu.dot_dimension_numbers<[1], [0], [0], [1], [0, 0, 1, 1], [], []>} : vector<128x128xbf16>, vector<128x32xbf16>, vector<128x32xf32> -> vector<128x32xf32>
    %35 = arith.addf %32, %34 : vector<128x32xf32>
    %c0_24 = arith.constant 0 : index
    %c0_25 = arith.constant 0 : index
    %36 = vector.load %arg10[%c0_24, %c0_25] : memref<128x32xf32, #tpu.memory_space<vmem>>, vector<128x32xf32>
    tpu.vector_store %arg10[%c0_24, %c0_25], %35 {strides = array<i32>} : memref<128x32xf32, #tpu.memory_space<vmem>>, vector<128x32xf32>,
    %c0_26 = arith.constant 0 : index
    %c0_27 = arith.constant 0 : index
    %37 = vector.load %arg8[%c0_26, %c0_27] : memref<128x1xf32, #tpu.memory_space<vmem>>, vector<128x1xf32>
    tpu.vector_store %arg8[%c0_26, %c0_27], %18 {strides = array<i32>} : memref<128x1xf32, #tpu.memory_space<vmem>>, vector<128x1xf32>,
    %c0_i32_28 = arith.constant 0 : i32
    %38 = arith.cmpi eq, %arg3, %c0_i32_28 : i32
    %39 = arith.extui %38 : i1 to i32
    %c0_i32_29 = arith.constant 0 : i32
    %40 = arith.cmpi ne, %39, %c0_i32_29 : i32
    scf.if %40 {
      %c0_30 = arith.constant 0 : index
      %c0_31 = arith.constant 0 : index
      %41 = vector.load %arg9[%c0_30, %c0_31] : memref<128x1xf32, #tpu.memory_space<vmem>>, vector<128x1xf32>
      %42 = tpu.reciprocal %41 {approx = true} : vector<128x1xf32> -> vector<128x1xf32>
      %c0_32 = arith.constant 0 : index
      %c0_33 = arith.constant 0 : index
      %43 = vector.load %arg10[%c0_32, %c0_33] : memref<128x32xf32, #tpu.memory_space<vmem>>, vector<128x32xf32>
      %44 = vector.broadcast %42 : vector<128x1xf32> to vector<128x32xf32>
      %45 = arith.mulf %43, %44 : vector<128x32xf32>
      %46 = vector.shape_cast %45 : vector<128x32xf32> to vector<1x128x32xf32>
      %47 = arith.truncf %46 : vector<1x128x32xf32> to vector<1x128x32xbf16>
      %c0_34 = arith.constant 0 : index
      %c0_35 = arith.constant 0 : index
      %c0_36 = arith.constant 0 : index
      %c0_37 = arith.constant 0 : index
      %48 = vector.load %arg7[%c0_34, %c0_35, %c0_36, %c0_37] : memref<1x1x128x32xbf16, #tpu.memory_space<vmem>>, vector<1x1x128x32xbf16>
      %49 = vector.shape_cast %48 : vector<1x1x128x32xbf16> to vector<1x128x32xbf16>
      %50 = vector.shape_cast %47 : vector<1x128x32xbf16> to vector<1x1x128x32xbf16>
      tpu.vector_store %arg7[%c0_34, %c0_35, %c0_36, %c0_37], %50 {strides = array<i32>} : memref<1x1x128x32xbf16, #tpu.memory_space<vmem>>, vector<1x1x128x32xbf16>,
    } else {
    }
    return
  }
  func.func @transform_0(%arg0: i32, %arg1: i32, %arg2: i32, %arg3: i32) -> (i32, i32, i32, i32) {
    %c0_i32 = arith.constant 0 : i32
    %c0_i32_0 = arith.constant 0 : i32
    return %arg0, %arg1, %arg2, %c0_i32 : i32, i32, i32, i32
  }
  func.func @transform_1(%arg0: i32, %arg1: i32, %arg2: i32, %arg3: i32) -> (i32, i32, i32, i32) {
    %c0_i32 = arith.constant 0 : i32
    %c0_i32_0 = arith.constant 0 : i32
    return %arg0, %arg1, %arg3, %c0_i32 : i32, i32, i32, i32
  }
  func.func @transform_2(%arg0: i32, %arg1: i32, %arg2: i32, %arg3: i32) -> (i32, i32, i32, i32) {
    %c0_i32 = arith.constant 0 : i32
    %c0_i32_0 = arith.constant 0 : i32
    return %arg0, %arg1, %arg3, %c0_i32 : i32, i32, i32, i32
  }
  func.func @transform_3(%arg0: i32, %arg1: i32, %arg2: i32, %arg3: i32) -> (i32, i32, i32, i32) {
    %c0_i32 = arith.constant 0 : i32
    %c0_i32_0 = arith.constant 0 : i32
    return %arg0, %arg1, %arg2, %c0_i32 : i32, i32, i32, i32
  }
}

</mosaic_0001>

<llo_original>
// kernel: tpu_custom_call.1
$region0: #{tpu_custom_call.1}
  #allocation0 [shape = 'u32[]', space=smem, size = 0x4, offset = 0x4, fixed_abs, tag = 'smem constant byte address 0x4 - core index']
  #allocation1 [shape = 'u32[144,128]{1,0:T(1,128)}', space=vmem, size = 0x12000, scoped, tag = 'internal scratch']
  #allocation2 [shape = 'f32[128,1]{1,0:T(8,128)}', space=vmem, size = 0x10000, scoped, tag = 'scratch operand']
  #allocation3 [shape = 'f32[128,1]{1,0:T(8,128)}', space=vmem, size = 0x10000, scoped, tag = 'scratch operand']
  #allocation4 [shape = 'f32[128,32]{1,0:T(8,128)}', space=vmem, size = 0x10000, scoped, tag = 'scratch operand']
  %s0 = inlined_call_operand.vmem [shape: bf16[2,4,128,32], index: 0, kind: input, shape index: {}]
  %s1 = inlined_call_operand.vmem [shape: bf16[2,4,128,32], index: 1, kind: input, shape index: {}]
  %s2 = inlined_call_operand.vmem [shape: bf16[2,4,128,32], index: 2, kind: input, shape index: {}]
  %s3 = inlined_call_operand.vmem [shape: bf16[2,4,128,32], index: 3, kind: output, shape index: {}]
  %s4 = sld [smem:[#allocation0]]
  $region53: #{tpu_custom_call.1} parent=0
    _
  %s6 = ssub.s32 1, %s4
  %s7 = scalar_select 0, %s6, %s4
  loop: start=0, step=1, limit=10
  $region2: #{tpu_custom_call.1} parent=0 // loop_pre_header
    _
  $region3: #{tpu_custom_call.1} parent=0 // loop_header
    %s9 = sphi 0, %s13
    %p10 = scmp.ge.s32.totalorder %s9, 10
    %s16 = sphi 0, %s42
    %s17 = sphi 0, %s38
    %s18 = sphi 0, %s34
    %s19 = sphi 0, %s30
    %s20 = sphi 0, %s16
    %s21 = sphi 0, %s17
    %s22 = sphi 0, %s18
    %s23 = sphi 0, %s19
    %s24 = sphi 0, %s20
    %s25 = sphi 0, %s21
    %s26 = sphi 0, %s22
    %s27 = sphi 0, %s23
    %s49 = sphi 0, %s51
    %s52 = sphi 0, %s49
    %s53 = sphi 0, %s52
    %s69 = sphi 0, %s53
    %s79 = sphi 0, %s81
    %s82 = sphi 0, %s79
    %s83 = sphi 0, %s82
    %s99 = sphi 0, %s83
    %s109 = sphi 0, %s111
    %s112 = sphi 0, %s109
    %s113 = sphi 0, %s112
    %s129 = sphi 0, %s113
    %s139 = sphi 0, %s141
    %s142 = sphi 0, %s139
    %s143 = sphi 0, %s142
    %s159 = sphi 0, %s143
  $region4: #{tpu_custom_call.1} parent=0 // loop_header_branch
    %12 = sbr.rel (%p10) target = $region8
  $region5: #{tpu_custom_call.1} parent=0 // loop_body
    %s14 = ssub.s32 %s9, 1
    %s15 = ssub.s32 %s9, 2
    %s28 = sadd.s32 1, %s19
    %p29 = scmp.ge.s32.totalorder %s28, 1
    %s30 = scalar_select %p29, 0, %s28
    %s31 = sadd.s32 1, %s18
    %s32 = scalar_select %p29, %s31, %s18
    %p33 = scmp.ge.s32.totalorder %s32, 1
    %s34 = scalar_select %p33, 0, %s32
    %s35 = sadd.s32 1, %s17
    %s36 = scalar_select %p33, %s35, %s17
    %p37 = scmp.ge.s32.totalorder %s36, 4
    %s38 = scalar_select %p37, 0, %s36
    %s39 = sadd.s32 1, %s16
    %s40 = scalar_select %p37, %s39, %s16
    %p41 = scmp.ge.s32.totalorder %s40, 2
    %s42 = scalar_select %p41, 0, %s40
    %s43 = ssub.s32 %s16, %s42
    %s44 = ssub.s32 %s17, %s38
    %s45 = sor.u32 %s43, %s44
    %s46 = ssub.s32 %s18, %s34
    %s47 = sor.u32 %s45, %s46
    %p48 = scmp.eq.s32.totalorder %s47, 0
    %s50 = sadd.s32 %s49, 1
    %s51 = scalar_select %p48, %s49, %s50
    %p54 = pneg %p48
    %p55 = scmp.eq.s32.totalorder %s9, 7
    %p56 = por %p54, %p55
    %p57 = scmp.ne.s32.totalorder %s49, %s52
    %p58 = scmp.eq.s32.totalorder %s9, 0
    %p59 = por %p57, %p58
    %p60 = scmp.ne.s32.totalorder %s49, %s52
    %p61 = scmp.eq.s32.totalorder %s14, 7
    %p62 = por %p60, %p61
    %p63 = scmp.ne.s32.totalorder %s52, %s53
    %p64 = scmp.eq.s32.totalorder %s14, 0
    %p65 = por %p63, %p64
    %p66 = scmp.ne.s32.totalorder %s52, %s53
    %p67 = scmp.eq.s32.totalorder %s15, 7
    %p68 = por %p66, %p67
    %p70 = scmp.ne.s32.totalorder %s53, %s69
    %p71 = scmp.eq.s32.totalorder %s15, 0
    %p72 = por %p70, %p71
    %s73 = ssub.s32 %s16, %s42
    %s74 = ssub.s32 %s17, %s38
    %s75 = sor.u32 %s73, %s74
    %s76 = ssub.s32 %s19, %s30
    %s77 = sor.u32 %s75, %s76
    %p78 = scmp.eq.s32.totalorder %s77, 0
    %s80 = sadd.s32 %s79, 1
    %s81 = scalar_select %p78, %s79, %s80
    %p84 = pneg %p78
    %p85 = scmp.eq.s32.totalorder %s9, 7
    %p86 = por %p84, %p85
    %p87 = scmp.ne.s32.totalorder %s79, %s82
    %p88 = scmp.eq.s32.totalorder %s9, 0
    %p89 = por %p87, %p88
    %p90 = scmp.ne.s32.totalorder %s79, %s82
    %p91 = scmp.eq.s32.totalorder %s14, 7
    %p92 = por %p90, %p91
    %p93 = scmp.ne.s32.totalorder %s82, %s83
    %p94 = scmp.eq.s32.totalorder %s14, 0
    %p95 = por %p93, %p94
    %p96 = scmp.ne.s32.totalorder %s82, %s83
    %p97 = scmp.eq.s32.totalorder %s15, 7
    %p98 = por %p96, %p97
    %p100 = scmp.ne.s32.totalorder %s83, %s99
    %p101 = scmp.eq.s32.totalorder %s15, 0
    %p102 = por %p100, %p101
    %s103 = ssub.s32 %s16, %s42
    %s104 = ssub.s32 %s17, %s38
    %s105 = sor.u32 %s103, %s104
    %s106 = ssub.s32 %s19, %s30
    %s107 = sor.u32 %s105, %s106
    %p108 = scmp.eq.s32.totalorder %s107, 0
    %s110 = sadd.s32 %s109, 1
    %s111 = scalar_select %p108, %s109, %s110
    %p114 = pneg %p108
    %p115 = scmp.eq.s32.totalorder %s9, 7
    %p116 = por %p114, %p115
    %p117 = scmp.ne.s32.totalorder %s109, %s112
    %p118 = scmp.eq.s32.totalorder %s9, 0
    %p119 = por %p117, %p118
    %p120 = scmp.ne.s32.totalorder %s109, %s112
    %p121 = scmp.eq.s32.totalorder %s14, 7
    %p122 = por %p120, %p121
    %p123 = scmp.ne.s32.totalorder %s112, %s113
    %p124 = scmp.eq.s32.totalorder %s14, 0
    %p125 = por %p123, %p124
    %p126 = scmp.ne.s32.totalorder %s112, %s113
    %p127 = scmp.eq.s32.totalorder %s15, 7
    %p128 = por %p126, %p127
    %p130 = scmp.ne.s32.totalorder %s113, %s129
    %p131 = scmp.eq.s32.totalorder %s15, 0
    %p132 = por %p130, %p131
    %s133 = ssub.s32 %s16, %s42
    %s134 = ssub.s32 %s17, %s38
    %s135 = sor.u32 %s133, %s134
    %s136 = ssub.s32 %s18, %s34
    %s137 = sor.u32 %s135, %s136
    %p138 = scmp.eq.s32.totalorder %s137, 0
    %s140 = sadd.s32 %s139, 1
    %s141 = scalar_select %p138, %s139, %s140
    %p144 = pneg %p138
    %p145 = scmp.eq.s32.totalorder %s9, 7
    %p146 = por %p144, %p145
    %p147 = scmp.ne.s32.totalorder %s139, %s142
    %p148 = scmp.eq.s32.totalorder %s9, 0
    %p149 = por %p147, %p148
    %p150 = scmp.ne.s32.totalorder %s139, %s142
    %p151 = scmp.eq.s32.totalorder %s14, 7
    %p152 = por %p150, %p151
    %p153 = scmp.ne.s32.totalorder %s142, %s143
    %p154 = scmp.eq.s32.totalorder %s14, 0
    %p155 = por %p153, %p154
    %p156 = scmp.ne.s32.totalorder %s142, %s143
    %p157 = scmp.eq.s32.totalorder %s15, 7
    %p158 = por %p156, %p157
    %p160 = scmp.ne.s32.totalorder %s143, %s159
    %p161 = scmp.eq.s32.totalorder %s15, 0
    %p162 = por %p160, %p161
    %p163 = scmp.le.s32.totalorder 1, %s9
    %p164 = scmp.lt.s32.totalorder %s9, 9
    %p165 = pnand %p163, %p164
    %p166 = pneg %p165
    // Predicated region
    $region9: #{tpu_custom_call.1} parent=5 // pred_check
      _
    $region10: #{tpu_custom_call.1} parent=5 // pred_check_branch
      %168 = sbr.rel (%p165) target = $region12
    $region11: #{tpu_custom_call.1} parent=5 // pred_region
      %s169 = ssub.s32 %s9, 1
    $region12: #{tpu_custom_call.1} parent=5 // pred_fallthru
      _
    %p170 = scmp.lt.s32.totalorder %s9, 8
    // Predicated region
    $region13: #{tpu_custom_call.1} parent=5 // pred_check
      %p171 = pneg %p170
    $region14: #{tpu_custom_call.1} parent=5 // pred_check_branch
      %173 = sbr.rel (%p171) target = $region16
    $region15: #{tpu_custom_call.1} parent=5 // pred_region
      // Predicated region
      $region17: #{tpu_custom_call.1} parent=15 // pred_check
        %p174 = pneg %p59
      $region18: #{tpu_custom_call.1} parent=15 // pred_check_branch
        %176 = sbr.rel (%p174) target = $region20
      $region19: #{tpu_custom_call.1} parent=15 // pred_region
        %s177 = smul.u32 16, %s18
        %p178 = scmp.lt.s32.totalorder %s16, 1
        %s179 = scalar_select %p178, %s16, 1
        %p180 = scmp.lt.s32.totalorder %s17, 3
        %s181 = scalar_select %p180, %s17, 3
        %p182 = scmp.lt.s32.totalorder %s177, 15
        %s183 = scalar_select %p182, %s177, 15
        %s184 = smul.addr %s181, 16
        %s185 = sadd.s32 %s183, %s184
        %s186 = smul.addr %s179, 64
        %s187 = sadd.s32 %s185, %s186
        %s188 = smul.addr %s187, 4
        %s189 = scalar_lea.vmem %s0, %s188
        %s190 = smul.u32 16, %s18
      $region20: #{tpu_custom_call.1} parent=15 // pred_fallthru
        _
      // Predicated region
      $region21: #{tpu_custom_call.1} parent=15 // pred_check
        %p191 = pneg %p89
      $region22: #{tpu_custom_call.1} parent=15 // pred_check_branch
        %193 = sbr.rel (%p191) target = $region24
      $region23: #{tpu_custom_call.1} parent=15 // pred_region
        %s194 = smul.u32 16, %s19
        %p195 = scmp.lt.s32.totalorder %s16, 1
        %s196 = scalar_select %p195, %s16, 1
        %p197 = scmp.lt.s32.totalorder %s17, 3
        %s198 = scalar_select %p197, %s17, 3
        %p199 = scmp.lt.s32.totalorder %s194, 15
        %s200 = scalar_select %p199, %s194, 15
        %s201 = smul.addr %s198, 16
        %s202 = sadd.s32 %s200, %s201
        %s203 = smul.addr %s196, 64
        %s204 = sadd.s32 %s202, %s203
        %s205 = smul.addr %s204, 4
        %s206 = scalar_lea.vmem %s1, %s205
        %s207 = smul.u32 16, %s19
      $region24: #{tpu_custom_call.1} parent=15 // pred_fallthru
        _
      // Predicated region
      $region25: #{tpu_custom_call.1} parent=15 // pred_check
        %p208 = pneg %p119
      $region26: #{tpu_custom_call.1} parent=15 // pred_check_branch
        %210 = sbr.rel (%p208) target = $region28
      $region27: #{tpu_custom_call.1} parent=15 // pred_region
        %s211 = smul.u32 16, %s19
        %p212 = scmp.lt.s32.totalorder %s16, 1
        %s213 = scalar_select %p212, %s16, 1
        %p214 = scmp.lt.s32.totalorder %s17, 3
        %s215 = scalar_select %p214, %s17, 3
        %p216 = scmp.lt.s32.totalorder %s211, 15
        %s217 = scalar_select %p216, %s211, 15
        %s218 = smul.addr %s215, 16
        %s219 = sadd.s32 %s217, %s218
        %s220 = smul.addr %s213, 64
        %s221 = sadd.s32 %s219, %s220
        %s222 = smul.addr %s221, 4
        %s223 = scalar_lea.vmem %s2, %s222
        %s224 = smul.u32 16, %s19
      $region28: #{tpu_custom_call.1} parent=15 // pred_fallthru
        _
    $region16: #{tpu_custom_call.1} parent=5 // pred_fallthru
      _
    %p225 = scmp.le.s32.totalorder 1, %s9
    %p226 = scmp.lt.s32.totalorder %s9, 9
    %p227 = pnand %p225, %p226
    %p228 = pneg %p227
    // Predicated region
    $region29: #{tpu_custom_call.1} parent=5 // pred_check
      _
    $region30: #{tpu_custom_call.1} parent=5 // pred_check_branch
      %230 = sbr.rel (%p227) target = $region32
    $region31: #{tpu_custom_call.1} parent=5 // pred_region
      %s231 = ssub.s32 %s9, 1
      %s232 = smul.u32 16, %s22
      %p233 = scmp.lt.s32.totalorder %s20, 1
      %s234 = scalar_select %p233, %s20, 1
      %p235 = scmp.lt.s32.totalorder %s21, 3
      %s236 = scalar_select %p235, %s21, 3
      %p237 = scmp.lt.s32.totalorder %s232, 15
      %s238 = scalar_select %p237, %s232, 15
      %s239 = smul.addr %s236, 16
      %s240 = sadd.s32 %s238, %s239
      %s241 = smul.addr %s234, 64
      %s242 = sadd.s32 %s240, %s241
      %s243 = smul.addr %s242, 4
      %s244 = scalar_lea.vmem %s0, %s243
      %p245 = pneg %p65
      %p246 = pneg %p62
      %s247 = smul.u32 16, %s23
      %p248 = scmp.lt.s32.totalorder %s20, 1
      %s249 = scalar_select %p248, %s20, 1
      %p250 = scmp.lt.s32.totalorder %s21, 3
      %s251 = scalar_select %p250, %s21, 3
      %p252 = scmp.lt.s32.totalorder %s247, 15
      %s253 = scalar_select %p252, %s247, 15
      %s254 = smul.addr %s251, 16
      %s255 = sadd.s32 %s253, %s254
      %s256 = smul.addr %s249, 64
      %s257 = sadd.s32 %s255, %s256
      %s258 = smul.addr %s257, 4
      %s259 = scalar_lea.vmem %s1, %s258
      %p260 = pneg %p95
      %p261 = pneg %p92
      %s262 = smul.u32 16, %s23
      %p263 = scmp.lt.s32.totalorder %s20, 1
      %s264 = scalar_select %p263, %s20, 1
      %p265 = scmp.lt.s32.totalorder %s21, 3
      %s266 = scalar_select %p265, %s21, 3
      %p267 = scmp.lt.s32.totalorder %s262, 15
      %s268 = scalar_select %p267, %s262, 15
      %s269 = smul.addr %s266, 16
      %s270 = sadd.s32 %s268, %s269
      %s271 = smul.addr %s264, 64
      %s272 = sadd.s32 %s270, %s271
      %s273 = smul.addr %s272, 4
      %s274 = scalar_lea.vmem %s2, %s273
      %p275 = pneg %p125
      %p276 = pneg %p122
      %p277 = pneg %p155
      %p278 = pneg %p152
      %s279 = smul.u32 16, %s22
      %p280 = scmp.lt.s32.totalorder %s20, 1
      %s281 = scalar_select %p280, %s20, 1
      %p282 = scmp.lt.s32.totalorder %s21, 3
      %s283 = scalar_select %p282, %s21, 3
      %p284 = scmp.lt.s32.totalorder %s279, 15
      %s285 = scalar_select %p284, %s279, 15
      %s286 = smul.addr %s283, 16
      %s287 = sadd.s32 %s285, %s286
      %s288 = smul.addr %s281, 64
      %s289 = sadd.s32 %s287, %s288
      %s290 = smul.addr %s289, 4
      %s291 = scalar_lea.vmem %s3, %s290
      %s292 = smul.u32 16, %s22
      %p293 = scmp.lt.s32.totalorder %s20, 1
      %s294 = scalar_select %p293, %s20, 1
      %p295 = scmp.lt.s32.totalorder %s21, 3
      %s296 = scalar_select %p295, %s21, 3
      %p297 = scmp.lt.s32.totalorder %s292, 15
      %s298 = scalar_select %p297, %s292, 15
      %s299 = smul.addr %s296, 16
      %s300 = sadd.s32 %s298, %s299
      %s301 = smul.addr %s294, 64
      %s302 = sadd.s32 %s300, %s301
      %s303 = smul.addr %s302, 4
      %s304 = scalar_lea.vmem %s0, %s303
      %s305 = smul.u32 16, %s22
      %s306 = smul.u32 16, %s23
      %p307 = scmp.lt.s32.totalorder %s20, 1
      %s308 = scalar_select %p307, %s20, 1
      %p309 = scmp.lt.s32.totalorder %s21, 3
      %s310 = scalar_select %p309, %s21, 3
      %p311 = scmp.lt.s32.totalorder %s306, 15
      %s312 = scalar_select %p311, %s306, 15
      %s313 = smul.addr %s310, 16
      %s314 = sadd.s32 %s312, %s313
      %s315 = smul.addr %s308, 64
      %s316 = sadd.s32 %s314, %s315
      %s317 = smul.addr %s316, 4
      %s318 = scalar_lea.vmem %s1, %s317
      %s319 = smul.u32 16, %s23
      %s320 = smul.u32 16, %s23
      %p321 = scmp.lt.s32.totalorder %s20, 1
      %s322 = scalar_select %p321, %s20, 1
      %p323 = scmp.lt.s32.totalorder %s21, 3
      %s324 = scalar_select %p323, %s21, 3
      %p325 = scmp.lt.s32.totalorder %s320, 15
      %s326 = scalar_select %p325, %s320, 15
      %s327 = smul.addr %s324, 16
      %s328 = sadd.s32 %s326, %s327
      %s329 = smul.addr %s322, 64
      %s330 = sadd.s32 %s328, %s329
      %s331 = smul.addr %s330, 4
      %s332 = scalar_lea.vmem %s2, %s331
      %s333 = smul.u32 16, %s23
      %s334 = smul.u32 16, %s22
      %p335 = scmp.lt.s32.totalorder %s20, 1
      %s336 = scalar_select %p335, %s20, 1
      %p337 = scmp.lt.s32.totalorder %s21, 3
      %s338 = scalar_select %p337, %s21, 3
      %p339 = scmp.lt.s32.totalorder %s334, 15
      %s340 = scalar_select %p339, %s334, 15
      %s341 = smul.addr %s338, 16
      %s342 = sadd.s32 %s340, %s341
      %s343 = smul.addr %s336, 64
      %s344 = sadd.s32 %s342, %s343
      %s345 = smul.addr %s344, 4
      %s346 = scalar_lea.vmem %s3, %s345
      %s347 = smul.u32 16, %s22
      %p349 = scmp.eq.s32.totalorder %s23, 0
      // Predicated region
      $region33: #{tpu_custom_call.1} parent=31 // pred_check
        %p350 = pneg %p349
      $region34: #{tpu_custom_call.1} parent=31 // pred_check_branch
        %352 = sbr.rel (%p350) target = $region36
      $region35: #{tpu_custom_call.1} parent=31 // pred_region
        %vm353 = vcmask 7168
        %354 = vst.msk [vmem:[#allocation2] sm:$0xff] %vm353, -1e+30
        %355 = vst.msk [vmem:[#allocation2 + $0x8] sm:$0xff] %vm353, -1e+30
        %356 = vst.msk [vmem:[#allocation2 + $0x10] sm:$0xff] %vm353, -1e+30
        %357 = vst.msk [vmem:[#allocation2 + $0x18] sm:$0xff] %vm353, -1e+30
        %358 = vst.msk [vmem:[#allocation2 + $0x20] sm:$0xff] %vm353, -1e+30
        %359 = vst.msk [vmem:[#allocation2 + $0x28] sm:$0xff] %vm353, -1e+30
        %360 = vst.msk [vmem:[#allocation2 + $0x30] sm:$0xff] %vm353, -1e+30
        %361 = vst.msk [vmem:[#allocation2 + $0x38] sm:$0xff] %vm353, -1e+30
        %362 = vst.msk [vmem:[#allocation2 + $0x40] sm:$0xff] %vm353, -1e+30
        %363 = vst.msk [vmem:[#allocation2 + $0x48] sm:$0xff] %vm353, -1e+30
        %364 = vst.msk [vmem:[#allocation2 + $0x50] sm:$0xff] %vm353, -1e+30
        %365 = vst.msk [vmem:[#allocation2 + $0x58] sm:$0xff] %vm353, -1e+30
        %366 = vst.msk [vmem:[#allocation2 + $0x60] sm:$0xff] %vm353, -1e+30
        %367 = vst.msk [vmem:[#allocation2 + $0x68] sm:$0xff] %vm353, -1e+30
        %368 = vst.msk [vmem:[#allocation2 + $0x70] sm:$0xff] %vm353, -1e+30
        %369 = vst.msk [vmem:[#allocation2 + $0x78] sm:$0xff] %vm353, -1e+30
        %370 = vst.msk [vmem:[#allocation3] sm:$0xff] %vm353, 0.0
        %371 = vst.msk [vmem:[#allocation3 + $0x8] sm:$0xff] %vm353, 0.0
        %372 = vst.msk [vmem:[#allocation3 + $0x10] sm:$0xff] %vm353, 0.0
        %373 = vst.msk [vmem:[#allocation3 + $0x18] sm:$0xff] %vm353, 0.0
        %374 = vst.msk [vmem:[#allocation3 + $0x20] sm:$0xff] %vm353, 0.0
        %375 = vst.msk [vmem:[#allocation3 + $0x28] sm:$0xff] %vm353, 0.0
        %376 = vst.msk [vmem:[#allocation3 + $0x30] sm:$0xff] %vm353, 0.0
        %377 = vst.msk [vmem:[#allocation3 + $0x38] sm:$0xff] %vm353, 0.0
        %378 = vst.msk [vmem:[#allocation3 + $0x40] sm:$0xff] %vm353, 0.0
        %379 = vst.msk [vmem:[#allocation3 + $0x48] sm:$0xff] %vm353, 0.0
        %380 = vst.msk [vmem:[#allocation3 + $0x50] sm:$0xff] %vm353, 0.0
        %381 = vst.msk [vmem:[#allocation3 + $0x58] sm:$0xff] %vm353, 0.0
        %382 = vst.msk [vmem:[#allocation3 + $0x60] sm:$0xff] %vm353, 0.0
        %383 = vst.msk [vmem:[#allocation3 + $0x68] sm:$0xff] %vm353, 0.0
        %384 = vst.msk [vmem:[#allocation3 + $0x70] sm:$0xff] %vm353, 0.0
        %385 = vst.msk [vmem:[#allocation3 + $0x78] sm:$0xff] %vm353, 0.0
        %vm386 = vcmask 261120
        %387 = vst.msk [vmem:[#allocation4] sm:$0xff] %vm386, 0.0
        %388 = vst.msk [vmem:[#allocation4 + $0x8] sm:$0xff] %vm386, 0.0
        %389 = vst.msk [vmem:[#allocation4 + $0x10] sm:$0xff] %vm386, 0.0
        %390 = vst.msk [vmem:[#allocation4 + $0x18] sm:$0xff] %vm386, 0.0
        %391 = vst.msk [vmem:[#allocation4 + $0x20] sm:$0xff] %vm386, 0.0
        %392 = vst.msk [vmem:[#allocation4 + $0x28] sm:$0xff] %vm386, 0.0
        %393 = vst.msk [vmem:[#allocation4 + $0x30] sm:$0xff] %vm386, 0.0
        %394 = vst.msk [vmem:[#allocation4 + $0x38] sm:$0xff] %vm386, 0.0
        %395 = vst.msk [vmem:[#allocation4 + $0x40] sm:$0xff] %vm386, 0.0
        %396 = vst.msk [vmem:[#allocation4 + $0x48] sm:$0xff] %vm386, 0.0
        %397 = vst.msk [vmem:[#allocation4 + $0x50] sm:$0xff] %vm386, 0.0
        %398 = vst.msk [vmem:[#allocation4 + $0x58] sm:$0xff] %vm386, 0.0
        %399 = vst.msk [vmem:[#allocation4 + $0x60] sm:$0xff] %vm386, 0.0
        %400 = vst.msk [vmem:[#allocation4 + $0x68] sm:$0xff] %vm386, 0.0
        %401 = vst.msk [vmem:[#allocation4 + $0x70] sm:$0xff] %vm386, 0.0
        %402 = vst.msk [vmem:[#allocation4 + $0x78] sm:$0xff] %vm386, 0.0
      $region36: #{tpu_custom_call.1} parent=31 // pred_fallthru
        _
      %v403 = vld [vmem:[%s304] sm:$0xf]
      %v404 = vld [vmem:[%s304 + $0x4] sm:$0xf]
      %v405 = vld [vmem:[%s304 + $0x8] sm:$0xf]
      %v406 = vld [vmem:[%s304 + $0xc] sm:$0xf]
      %v407 = vld [vmem:[%s304 + $0x10] sm:$0xf]
      %v408 = vld [vmem:[%s304 + $0x14] sm:$0xf]
      %v409 = vld [vmem:[%s304 + $0x18] sm:$0xf]
      %v410 = vld [vmem:[%s304 + $0x1c] sm:$0xf]
      %v411 = vld [vmem:[%s304 + $0x20] sm:$0xf]
      %v412 = vld [vmem:[%s304 + $0x24] sm:$0xf]
      %v413 = vld [vmem:[%s304 + $0x28] sm:$0xf]
      %v414 = vld [vmem:[%s304 + $0x2c] sm:$0xf]
      %v415 = vld [vmem:[%s304 + $0x30] sm:$0xf]
      %v416 = vld [vmem:[%s304 + $0x34] sm:$0xf]
      %v417 = vld [vmem:[%s304 + $0x38] sm:$0xf]
      %v418 = vld [vmem:[%s304 + $0x3c] sm:$0xf]
      %v419 = vunpack.c.l.bf16 %v403
      %v420 = vunpack.c.l.bf16 %v404
      %v421 = vunpack.c.l.bf16 %v405
      %v422 = vunpack.c.l.bf16 %v406
      %v423 = vunpack.c.l.bf16 %v407
      %v424 = vunpack.c.l.bf16 %v408
      %v425 = vunpack.c.l.bf16 %v409
      %v426 = vunpack.c.l.bf16 %v410
      %v427 = vunpack.c.l.bf16 %v411
      %v428 = vunpack.c.l.bf16 %v412
      %v429 = vunpack.c.l.bf16 %v413
      %v430 = vunpack.c.l.bf16 %v414
      %v431 = vunpack.c.l.bf16 %v415
      %v432 = vunpack.c.l.bf16 %v416
      %v433 = vunpack.c.l.bf16 %v417
      %v434 = vunpack.c.l.bf16 %v418
      %v435 = vmul.f32 %v419, 0.17677669
      %v436 = vmul.f32 %v420, 0.17677669
      %v437 = vmul.f32 %v421, 0.17677669
      %v438 = vmul.f32 %v422, 0.17677669
      %v439 = vmul.f32 %v423, 0.17677669
      %v440 = vmul.f32 %v424, 0.17677669
      %v441 = vmul.f32 %v425, 0.17677669
      %v442 = vmul.f32 %v426, 0.17677669
      %v443 = vmul.f32 %v427, 0.17677669
      %v444 = vmul.f32 %v428, 0.17677669
      %v445 = vmul.f32 %v429, 0.17677669
      %v446 = vmul.f32 %v430, 0.17677669
      %v447 = vmul.f32 %v431, 0.17677669
      %v448 = vmul.f32 %v432, 0.17677669
      %v449 = vmul.f32 %v433, 0.17677669
      %v450 = vmul.f32 %v434, 0.17677669
      %v451 = vpack.c.bf16 %v436, %v435
      %v452 = vpack.c.bf16 %v438, %v437
      %v453 = vpack.c.bf16 %v440, %v439
      %v454 = vpack.c.bf16 %v442, %v441
      %v455 = vpack.c.bf16 %v444, %v443
      %v456 = vpack.c.bf16 %v446, %v445
      %v457 = vpack.c.bf16 %v448, %v447
      %v458 = vpack.c.bf16 %v450, %v449
      %v459 = vld [vmem:[%s318] sm:$0xf]
      %v460 = vld [vmem:[%s318 + $0x4] sm:$0xf]
      %v461 = vld [vmem:[%s318 + $0x8] sm:$0xf]
      %v462 = vld [vmem:[%s318 + $0xc] sm:$0xf]
      %v463 = vld [vmem:[%s318 + $0x10] sm:$0xf]
      %v464 = vld [vmem:[%s318 + $0x14] sm:$0xf]
      %v465 = vld [vmem:[%s318 + $0x18] sm:$0xf]
      %v466 = vld [vmem:[%s318 + $0x1c] sm:$0xf]
      %v467 = vld [vmem:[%s318 + $0x20] sm:$0xf]
      %v468 = vld [vmem:[%s318 + $0x24] sm:$0xf]
      %v469 = vld [vmem:[%s318 + $0x28] sm:$0xf]
      %v470 = vld [vmem:[%s318 + $0x2c] sm:$0xf]
      %v471 = vld [vmem:[%s318 + $0x30] sm:$0xf]
      %v472 = vld [vmem:[%s318 + $0x34] sm:$0xf]
      %v473 = vld [vmem:[%s318 + $0x38] sm:$0xf]
      %v474 = vld [vmem:[%s318 + $0x3c] sm:$0xf]
      %v475 = vld [vmem:[%s332] sm:$0xf]
      %v476 = vld [vmem:[%s332 + $0x4] sm:$0xf]
      %v477 = vld [vmem:[%s332 + $0x8] sm:$0xf]
      %v478 = vld [vmem:[%s332 + $0xc] sm:$0xf]
      %v479 = vld [vmem:[%s332 + $0x10] sm:$0xf]
      %v480 = vld [vmem:[%s332 + $0x14] sm:$0xf]
      %v481 = vld [vmem:[%s332 + $0x18] sm:$0xf]
      %v482 = vld [vmem:[%s332 + $0x1c] sm:$0xf]
      %v483 = vld [vmem:[%s332 + $0x20] sm:$0xf]
      %v484 = vld [vmem:[%s332 + $0x24] sm:$0xf]
      %v485 = vld [vmem:[%s332 + $0x28] sm:$0xf]
      %v486 = vld [vmem:[%s332 + $0x2c] sm:$0xf]
      %v487 = vld [vmem:[%s332 + $0x30] sm:$0xf]
      %v488 = vld [vmem:[%s332 + $0x34] sm:$0xf]
      %v489 = vld [vmem:[%s332 + $0x38] sm:$0xf]
      %v490 = vld [vmem:[%s332 + $0x3c] sm:$0xf]
      %v507 = vunpack.c.l.b16 %v459
      %v508 = vunpack.c.l.b16 %v460
      %v509 = vunpack.c.l.b16 %v461
      %v510 = vunpack.c.l.b16 %v462
      %v511 = vunpack.c.l.b16 %v463
      %v512 = vunpack.c.l.b16 %v464
      %v513 = vunpack.c.l.b16 %v465
      %v514 = vunpack.c.l.b16 %v466
      %v515 = vunpack.c.l.b16 %v467
      %v516 = vunpack.c.l.b16 %v468
      %v517 = vunpack.c.l.b16 %v469
      %v518 = vunpack.c.l.b16 %v470
      %v519 = vunpack.c.l.b16 %v471
      %v520 = vunpack.c.l.b16 %v472
      %v521 = vunpack.c.l.b16 %v473
      %v522 = vunpack.c.l.b16 %v474
      %v523 = vpack.c.b16 %v508, %v507
      %v524 = vpack.c.b16 %v510, %v509
      %v525 = vpack.c.b16 %v512, %v511
      %v526 = vpack.c.b16 %v514, %v513
      %v527 = vpack.c.b16 %v516, %v515
      %v528 = vpack.c.b16 %v518, %v517
      %v529 = vpack.c.b16 %v520, %v519
      %v530 = vpack.c.b16 %v522, %v521
      %vm531 = vcmask 261120
      %v533 = vsel %vm531, %v451, 0
      %v536 = vsel %vm531, %v452, 0
      %v539 = vsel %vm531, %v453, 0
      %v542 = vsel %vm531, %v454, 0
      %v545 = vsel %vm531, %v455, 0
      %v548 = vsel %vm531, %v456, 0
      %v551 = vsel %vm531, %v457, 0
      %v554 = vsel %vm531, %v458, 0
      %v557 = vsel %vm531, %v523, 0
      %v560 = vsel %vm531, %v524, 0
      %v563 = vsel %vm531, %v525, 0
      %v566 = vsel %vm531, %v526, 0
      %v569 = vsel %vm531, %v527, 0
      %v572 = vsel %vm531, %v528, 0
      %v575 = vsel %vm531, %v529, 0
      %v578 = vsel %vm531, %v530, 0
      %580 = vmatprep.subr.bf16.mxu0 0
      %581 = vmatpush1.bf16.xpose.msra.mxu0 %v578
      %582 = vmatprep.subr.bf16.mxu0 0
      %583 = vmatpush1.bf16.xpose.msra.mxu0 %v575
      %584 = vmatprep.subr.bf16.mxu0 0
      %585 = vmatpush1.bf16.xpose.msra.mxu0 %v572
      %586 = vmatprep.subr.bf16.mxu0 0
      %587 = vmatpush1.bf16.xpose.msra.mxu0 %v569
      %588 = vmatprep.subr.bf16.mxu0 0
      %589 = vmatpush1.bf16.xpose.msra.mxu0 %v566
      %590 = vmatprep.subr.bf16.mxu0 0
      %591 = vmatpush1.bf16.xpose.msra.mxu0 %v563
      %592 = vmatprep.subr.bf16.mxu0 0
      %593 = vmatpush1.bf16.xpose.msra.mxu0 %v560
      %594 = vmatprep.subr.bf16.mxu0 0
      %595 = vmatpush1.bf16.xpose.msra.mxu0 %v557
      %596 = vmatprep.subr.bf16.mxu0 0
      %597 = vmatpush2.bf16.xpose.msra.mxu0 0
      %598 = vmatprep.subr.bf16.mxu0 0
      %599 = vmatpush2.bf16.xpose.msra.mxu0 0
      %600 = vmatprep.subr.bf16.mxu0 0
      %601 = vmatpush2.bf16.xpose.msra.mxu0 0
      %602 = vmatprep.subr.bf16.mxu0 0
      %603 = vmatpush2.bf16.xpose.msra.mxu0 0
      %604 = vmatprep.subr.bf16.mxu0 0
      %605 = vmatpush2.bf16.xpose.msra.mxu0 0
      %606 = vmatprep.subr.bf16.mxu0 0
      %607 = vmatpush2.bf16.xpose.msra.mxu0 0
      %608 = vmatprep.subr.bf16.mxu0 0
      %609 = vmatpush2.bf16.xpose.msra.mxu0 0
      %610 = vmatprep.subr.bf16.mxu0 0
      %611 = vmatpush2.bf16.xpose.msra.mxu0 0
      %612 = vmatprep.mubr.bf16.mxu0 0
      %613 = vmatmul.mubr.bf16.gmra.mxu0 %v533
      %v614 = vpop.f32.mrf.mxu0
      %v615 = vadd.f32 0.0, %v614
      %v616 = vpop.f32.mrf.mxu0
      %v617 = vpop.f32.mrf.mxu0
      %v618 = vadd.f32 0.0, %v617
      %v619 = vpop.f32.mrf.mxu0
      %620 = vmatprep.mubr.bf16.mxu0 0
      %621 = vmatmul.mubr.bf16.gmra.mxu0 %v536
      %v622 = vpop.f32.mrf.mxu0
      %v623 = vadd.f32 0.0, %v622
      %v624 = vpop.f32.mrf.mxu0
      %v625 = vpop.f32.mrf.mxu0
      %v626 = vadd.f32 0.0, %v625
      %v627 = vpop.f32.mrf.mxu0
      %628 = vmatprep.mubr.bf16.mxu0 0
      %629 = vmatmul.mubr.bf16.gmra.mxu0 %v539
      %v630 = vpop.f32.mrf.mxu0
      %v631 = vadd.f32 0.0, %v630
      %v632 = vpop.f32.mrf.mxu0
      %v633 = vpop.f32.mrf.mxu0
      %v634 = vadd.f32 0.0, %v633
      %v635 = vpop.f32.mrf.mxu0
      %636 = vmatprep.mubr.bf16.mxu0 0
      %637 = vmatmul.mubr.bf16.gmra.mxu0 %v542
      %v638 = vpop.f32.mrf.mxu0
      %v639 = vadd.f32 0.0, %v638
      %v640 = vpop.f32.mrf.mxu0
      %v641 = vpop.f32.mrf.mxu0
      %v642 = vadd.f32 0.0, %v641
      %v643 = vpop.f32.mrf.mxu0
      %644 = vmatprep.mubr.bf16.mxu0 0
      %645 = vmatmul.mubr.bf16.gmra.mxu0 %v545
      %v646 = vpop.f32.mrf.mxu0
      %v647 = vadd.f32 0.0, %v646
      %v648 = vpop.f32.mrf.mxu0
      %v649 = vpop.f32.mrf.mxu0
      %v650 = vadd.f32 0.0, %v649
      %v651 = vpop.f32.mrf.mxu0
      %652 = vmatprep.mubr.bf16.mxu0 0
      %653 = vmatmul.mubr.bf16.gmra.mxu0 %v548
      %v654 = vpop.f32.mrf.mxu0
      %v655 = vadd.f32 0.0, %v654
      %v656 = vpop.f32.mrf.mxu0
      %v657 = vpop.f32.mrf.mxu0
      %v658 = vadd.f32 0.0, %v657
      %v659 = vpop.f32.mrf.mxu0
      %660 = vmatprep.mubr.bf16.mxu0 0
      %661 = vmatmul.mubr.bf16.gmra.mxu0 %v551
      %v662 = vpop.f32.mrf.mxu0
      %v663 = vadd.f32 0.0, %v662
      %v664 = vpop.f32.mrf.mxu0
      %v665 = vpop.f32.mrf.mxu0
      %v666 = vadd.f32 0.0, %v665
      %v667 = vpop.f32.mrf.mxu0
      %668 = vmatprep.mubr.bf16.mxu0 0
      %669 = vmatmul.mubr.bf16.gmra.mxu0 %v554
      %v670 = vpop.f32.mrf.mxu0
      %v671 = vadd.f32 0.0, %v670
      %v672 = vpop.f32.mrf.mxu0
      %v673 = vpop.f32.mrf.mxu0
      %v674 = vadd.f32 0.0, %v673
      %v675 = vpop.f32.mrf.mxu0
      %676 = vdwg.mxu0
      %v677 = vld [vmem:[#allocation2] sm:$0xff]
      %v678 = vld [vmem:[#allocation2 + $0x8] sm:$0xff]
      %v679 = vld [vmem:[#allocation2 + $0x10] sm:$0xff]
      %v680 = vld [vmem:[#allocation2 + $0x18] sm:$0xff]
      %v681 = vld [vmem:[#allocation2 + $0x20] sm:$0xff]
      %v682 = vld [vmem:[#allocation2 + $0x28] sm:$0xff]
      %v683 = vld [vmem:[#allocation2 + $0x30] sm:$0xff]
      %v684 = vld [vmem:[#allocation2 + $0x38] sm:$0xff]
      %v685 = vld [vmem:[#allocation2 + $0x40] sm:$0xff]
      %v686 = vld [vmem:[#allocation2 + $0x48] sm:$0xff]
      %v687 = vld [vmem:[#allocation2 + $0x50] sm:$0xff]
      %v688 = vld [vmem:[#allocation2 + $0x58] sm:$0xff]
      %v689 = vld [vmem:[#allocation2 + $0x60] sm:$0xff]
      %v690 = vld [vmem:[#allocation2 + $0x68] sm:$0xff]
      %v691 = vld [vmem:[#allocation2 + $0x70] sm:$0xff]
      %v692 = vld [vmem:[#allocation2 + $0x78] sm:$0xff]
      %693 = vmax.xlane.f32.xlu0 %v615
      %v694 = vpop.xlane.xlu0 %693
      %695 = vmax.xlane.f32.xlu0 %v618
      %v696 = vpop.xlane.xlu0 %695
      %697 = vmax.xlane.f32.xlu0 %v623
      %v698 = vpop.xlane.xlu0 %697
      %699 = vmax.xlane.f32.xlu0 %v626
      %v700 = vpop.xlane.xlu0 %699
      %701 = vmax.xlane.f32.xlu0 %v631
      %v702 = vpop.xlane.xlu0 %701
      %703 = vmax.xlane.f32.xlu0 %v634
      %v704 = vpop.xlane.xlu0 %703
      %705 = vmax.xlane.f32.xlu0 %v639
      %v706 = vpop.xlane.xlu0 %705
      %707 = vmax.xlane.f32.xlu0 %v642
      %v708 = vpop.xlane.xlu0 %707
      %709 = vmax.xlane.f32.xlu0 %v647
      %v710 = vpop.xlane.xlu0 %709
      %711 = vmax.xlane.f32.xlu0 %v650
      %v712 = vpop.xlane.xlu0 %711
      %713 = vmax.xlane.f32.xlu0 %v655
      %v714 = vpop.xlane.xlu0 %713
      %715 = vmax.xlane.f32.xlu0 %v658
      %v716 = vpop.xlane.xlu0 %715
      %717 = vmax.xlane.f32.xlu0 %v663
      %v718 = vpop.xlane.xlu0 %717
      %719 = vmax.xlane.f32.xlu0 %v666
      %v720 = vpop.xlane.xlu0 %719
      %721 = vmax.xlane.f32.xlu0 %v671
      %v722 = vpop.xlane.xlu0 %721
      %723 = vmax.xlane.f32.xlu0 %v674
      %v724 = vpop.xlane.xlu0 %723
      %v725 = vmax.f32 %v677, %v694
      %v726 = vmax.f32 %v678, %v696
      %v727 = vmax.f32 %v679, %v698
      %v728 = vmax.f32 %v680, %v700
      %v729 = vmax.f32 %v681, %v702
      %v730 = vmax.f32 %v682, %v704
      %v731 = vmax.f32 %v683, %v706
      %v732 = vmax.f32 %v684, %v708
      %v733 = vmax.f32 %v685, %v710
      %v734 = vmax.f32 %v686, %v712
      %v735 = vmax.f32 %v687, %v714
      %v736 = vmax.f32 %v688, %v716
      %v737 = vmax.f32 %v689, %v718
      %v738 = vmax.f32 %v690, %v720
      %v739 = vmax.f32 %v691, %v722
      %v740 = vmax.f32 %v692, %v724
      %v741 = vsub.f32 %v677, %v725
      %v742 = vsub.f32 %v678, %v726
      %v743 = vsub.f32 %v679, %v727
      %v744 = vsub.f32 %v680, %v728
      %v745 = vsub.f32 %v681, %v729
      %v746 = vsub.f32 %v682, %v730
      %v747 = vsub.f32 %v683, %v731
      %v748 = vsub.f32 %v684, %v732
      %v749 = vsub.f32 %v685, %v733
      %v750 = vsub.f32 %v686, %v734
      %v751 = vsub.f32 %v687, %v735
      %v752 = vsub.f32 %v688, %v736
      %v753 = vsub.f32 %v689, %v737
      %v754 = vsub.f32 %v690, %v738
      %v755 = vsub.f32 %v691, %v739
      %v756 = vsub.f32 %v692, %v740
      %v757 = vmul.f32 %v741, 1.442695
      %v758 = vpow.pop %v757
      %v759 = vmul.f32 %v742, 1.442695
      %v760 = vpow.pop %v759
      %v761 = vmul.f32 %v743, 1.442695
      %v762 = vpow.pop %v761
      %v763 = vmul.f32 %v744, 1.442695
      %v764 = vpow.pop %v763
      %v765 = vmul.f32 %v745, 1.442695
      %v766 = vpow.pop %v765
      %v767 = vmul.f32 %v746, 1.442695
      %v768 = vpow.pop %v767
      %v769 = vmul.f32 %v747, 1.442695
      %v770 = vpow.pop %v769
      %v771 = vmul.f32 %v748, 1.442695
      %v772 = vpow.pop %v771
      %v773 = vmul.f32 %v749, 1.442695
      %v774 = vpow.pop %v773
      %v775 = vmul.f32 %v750, 1.442695
      %v776 = vpow.pop %v775
      %v777 = vmul.f32 %v751, 1.442695
      %v778 = vpow.pop %v777
      %v779 = vmul.f32 %v752, 1.442695
      %v780 = vpow.pop %v779
      %v781 = vmul.f32 %v753, 1.442695
      %v782 = vpow.pop %v781
      %v783 = vmul.f32 %v754, 1.442695
      %v784 = vpow.pop %v783
      %v785 = vmul.f32 %v755, 1.442695
      %v786 = vpow.pop %v785
      %v787 = vmul.f32 %v756, 1.442695
      %v788 = vpow.pop %v787
      %790 = vset.pattern.permute.xlu0 0
      %791 = vperm.xlu0 %790, %v725
      %v792 = vpop.permute.xlu0 %791
      %795 = vset.pattern.permute.xlu0 0
      %796 = vperm.xlu0 %795, %v726
      %v797 = vpop.permute.xlu0 %796
      %800 = vset.pattern.permute.xlu0 0
      %801 = vperm.xlu0 %800, %v727
      %v802 = vpop.permute.xlu0 %801
      %805 = vset.pattern.permute.xlu0 0
      %806 = vperm.xlu0 %805, %v728
      %v807 = vpop.permute.xlu0 %806
      %810 = vset.pattern.permute.xlu0 0
      %811 = vperm.xlu0 %810, %v729
      %v812 = vpop.permute.xlu0 %811
      %815 = vset.pattern.permute.xlu0 0
      %816 = vperm.xlu0 %815, %v730
      %v817 = vpop.permute.xlu0 %816
      %820 = vset.pattern.permute.xlu0 0
      %821 = vperm.xlu0 %820, %v731
      %v822 = vpop.permute.xlu0 %821
      %825 = vset.pattern.permute.xlu0 0
      %826 = vperm.xlu0 %825, %v732
      %v827 = vpop.permute.xlu0 %826
      %830 = vset.pattern.permute.xlu0 0
      %831 = vperm.xlu0 %830, %v733
      %v832 = vpop.permute.xlu0 %831
      %835 = vset.pattern.permute.xlu0 0
      %836 = vperm.xlu0 %835, %v734
      %v837 = vpop.permute.xlu0 %836
      %840 = vset.pattern.permute.xlu0 0
      %841 = vperm.xlu0 %840, %v735
      %v842 = vpop.permute.xlu0 %841
      %845 = vset.pattern.permute.xlu0 0
      %846 = vperm.xlu0 %845, %v736
      %v847 = vpop.permute.xlu0 %846
      %850 = vset.pattern.permute.xlu0 0
      %851 = vperm.xlu0 %850, %v737
      %v852 = vpop.permute.xlu0 %851
      %855 = vset.pattern.permute.xlu0 0
      %856 = vperm.xlu0 %855, %v738
      %v857 = vpop.permute.xlu0 %856
      %860 = vset.pattern.permute.xlu0 0
      %861 = vperm.xlu0 %860, %v739
      %v862 = vpop.permute.xlu0 %861
      %865 = vset.pattern.permute.xlu0 0
      %866 = vperm.xlu0 %865, %v740
      %v867 = vpop.permute.xlu0 %866
      %v869 = vsub.f32 %v615, %v792
      %v870 = vsub.f32 %v618, %v797
      %v871 = vsub.f32 %v623, %v802
      %v872 = vsub.f32 %v626, %v807
      %v873 = vsub.f32 %v631, %v812
      %v874 = vsub.f32 %v634, %v817
      %v875 = vsub.f32 %v639, %v822
      %v876 = vsub.f32 %v642, %v827
      %v877 = vsub.f32 %v647, %v832
      %v878 = vsub.f32 %v650, %v837
      %v879 = vsub.f32 %v655, %v842
      %v880 = vsub.f32 %v658, %v847
      %v881 = vsub.f32 %v663, %v852
      %v882 = vsub.f32 %v666, %v857
      %v883 = vsub.f32 %v671, %v862
      %v884 = vsub.f32 %v674, %v867
      %v885 = vmul.f32 %v869, 1.442695
      %v886 = vpow.pop %v885
      %v887 = vmul.f32 %v870, 1.442695
      %v888 = vpow.pop %v887
      %v889 = vmul.f32 %v871, 1.442695
      %v890 = vpow.pop %v889
      %v891 = vmul.f32 %v872, 1.442695
      %v892 = vpow.pop %v891
      %v893 = vmul.f32 %v873, 1.442695
      %v894 = vpow.pop %v893
      %v895 = vmul.f32 %v874, 1.442695
      %v896 = vpow.pop %v895
      %v897 = vmul.f32 %v875, 1.442695
      %v898 = vpow.pop %v897
      %v899 = vmul.f32 %v876, 1.442695
      %v900 = vpow.pop %v899
      %v901 = vmul.f32 %v877, 1.442695
      %v902 = vpow.pop %v901
      %v903 = vmul.f32 %v878, 1.442695
      %v904 = vpow.pop %v903
      %v905 = vmul.f32 %v879, 1.442695
      %v906 = vpow.pop %v905
      %v907 = vmul.f32 %v880, 1.442695
      %v908 = vpow.pop %v907
      %v909 = vmul.f32 %v881, 1.442695
      %v910 = vpow.pop %v909
      %v911 = vmul.f32 %v882, 1.442695
      %v912 = vpow.pop %v911
      %v913 = vmul.f32 %v883, 1.442695
      %v914 = vpow.pop %v913
      %v915 = vmul.f32 %v884, 1.442695
      %v916 = vpow.pop %v915
      %v917 = vld [vmem:[#allocation3] sm:$0xff]
      %v918 = vld [vmem:[#allocation3 + $0x8] sm:$0xff]
      %v919 = vld [vmem:[#allocation3 + $0x10] sm:$0xff]
      %v920 = vld [vmem:[#allocation3 + $0x18] sm:$0xff]
      %v921 = vld [vmem:[#allocation3 + $0x20] sm:$0xff]
      %v922 = vld [vmem:[#allocation3 + $0x28] sm:$0xff]
      %v923 = vld [vmem:[#allocation3 + $0x30] sm:$0xff]
      %v924 = vld [vmem:[#allocation3 + $0x38] sm:$0xff]
      %v925 = vld [vmem:[#allocation3 + $0x40] sm:$0xff]
      %v926 = vld [vmem:[#allocation3 + $0x48] sm:$0xff]
      %v927 = vld [vmem:[#allocation3 + $0x50] sm:$0xff]
      %v928 = vld [vmem:[#allocation3 + $0x58] sm:$0xff]
      %v929 = vld [vmem:[#allocation3 + $0x60] sm:$0xff]
      %v930 = vld [vmem:[#allocation3 + $0x68] sm:$0xff]
      %v931 = vld [vmem:[#allocation3 + $0x70] sm:$0xff]
      %v932 = vld [vmem:[#allocation3 + $0x78] sm:$0xff]
      %v933 = vmul.f32 %v758, %v917
      %v934 = vmul.f32 %v760, %v918
      %v935 = vmul.f32 %v762, %v919
      %v936 = vmul.f32 %v764, %v920
      %v937 = vmul.f32 %v766, %v921
      %v938 = vmul.f32 %v768, %v922
      %v939 = vmul.f32 %v770, %v923
      %v940 = vmul.f32 %v772, %v924
      %v941 = vmul.f32 %v774, %v925
      %v942 = vmul.f32 %v776, %v926
      %v943 = vmul.f32 %v778, %v927
      %v944 = vmul.f32 %v780, %v928
      %v945 = vmul.f32 %v782, %v929
      %v946 = vmul.f32 %v784, %v930
      %v947 = vmul.f32 %v786, %v931
      %v948 = vmul.f32 %v788, %v932
      %949 = vadd.xlane.f32.xlu0 %v886
      %v950 = vpop.xlane.xlu0 %949
      %951 = vadd.xlane.f32.xlu0 %v888
      %v952 = vpop.xlane.xlu0 %951
      %953 = vadd.xlane.f32.xlu0 %v890
      %v954 = vpop.xlane.xlu0 %953
      %955 = vadd.xlane.f32.xlu0 %v892
      %v956 = vpop.xlane.xlu0 %955
      %957 = vadd.xlane.f32.xlu0 %v894
      %v958 = vpop.xlane.xlu0 %957
      %959 = vadd.xlane.f32.xlu0 %v896
      %v960 = vpop.xlane.xlu0 %959
      %961 = vadd.xlane.f32.xlu0 %v898
      %v962 = vpop.xlane.xlu0 %961
      %963 = vadd.xlane.f32.xlu0 %v900
      %v964 = vpop.xlane.xlu0 %963
      %965 = vadd.xlane.f32.xlu0 %v902
      %v966 = vpop.xlane.xlu0 %965
      %967 = vadd.xlane.f32.xlu0 %v904
      %v968 = vpop.xlane.xlu0 %967
      %969 = vadd.xlane.f32.xlu0 %v906
      %v970 = vpop.xlane.xlu0 %969
      %971 = vadd.xlane.f32.xlu0 %v908
      %v972 = vpop.xlane.xlu0 %971
      %973 = vadd.xlane.f32.xlu0 %v910
      %v974 = vpop.xlane.xlu0 %973
      %975 = vadd.xlane.f32.xlu0 %v912
      %v976 = vpop.xlane.xlu0 %975
      %977 = vadd.xlane.f32.xlu0 %v914
      %v978 = vpop.xlane.xlu0 %977
      %979 = vadd.xlane.f32.xlu0 %v916
      %v980 = vpop.xlane.xlu0 %979
      %v981 = vadd.f32 %v933, %v950
      %v982 = vadd.f32 %v934, %v952
      %v983 = vadd.f32 %v935, %v954
      %v984 = vadd.f32 %v936, %v956
      %v985 = vadd.f32 %v937, %v958
      %v986 = vadd.f32 %v938, %v960
      %v987 = vadd.f32 %v939, %v962
      %v988 = vadd.f32 %v940, %v964
      %v989 = vadd.f32 %v941, %v966
      %v990 = vadd.f32 %v942, %v968
      %v991 = vadd.f32 %v943, %v970
      %v992 = vadd.f32 %v944, %v972
      %v993 = vadd.f32 %v945, %v974
      %v994 = vadd.f32 %v946, %v976
      %v995 = vadd.f32 %v947, %v978
      %v996 = vadd.f32 %v948, %v980
      %vm997 = vcmask 7168
      %998 = vst.msk [vmem:[#allocation3] sm:$0xff] %vm997, %v981
      %999 = vst.msk [vmem:[#allocation3 + $0x8] sm:$0xff] %vm997, %v982
      %1000 = vst.msk [vmem:[#allocation3 + $0x10] sm:$0xff] %vm997, %v983
      %1001 = vst.msk [vmem:[#allocation3 + $0x18] sm:$0xff] %vm997, %v984
      %1002 = vst.msk [vmem:[#allocation3 + $0x20] sm:$0xff] %vm997, %v985
      %1003 = vst.msk [vmem:[#allocation3 + $0x28] sm:$0xff] %vm997, %v986
      %1004 = vst.msk [vmem:[#allocation3 + $0x30] sm:$0xff] %vm997, %v987
      %1005 = vst.msk [vmem:[#allocation3 + $0x38] sm:$0xff] %vm997, %v988
      %1006 = vst.msk [vmem:[#allocation3 + $0x40] sm:$0xff] %vm997, %v989
      %1007 = vst.msk [vmem:[#allocation3 + $0x48] sm:$0xff] %vm997, %v990
      %1008 = vst.msk [vmem:[#allocation3 + $0x50] sm:$0xff] %vm997, %v991
      %1009 = vst.msk [vmem:[#allocation3 + $0x58] sm:$0xff] %vm997, %v992
      %1010 = vst.msk [vmem:[#allocation3 + $0x60] sm:$0xff] %vm997, %v993
      %1011 = vst.msk [vmem:[#allocation3 + $0x68] sm:$0xff] %vm997, %v994
      %1012 = vst.msk [vmem:[#allocation3 + $0x70] sm:$0xff] %vm997, %v995
      %1013 = vst.msk [vmem:[#allocation3 + $0x78] sm:$0xff] %vm997, %v996
      %v1014 = vld [vmem:[#allocation4] sm:$0xff]
      %v1015 = vld [vmem:[#allocation4 + $0x8] sm:$0xff]
      %v1016 = vld [vmem:[#allocation4 + $0x10] sm:$0xff]
      %v1017 = vld [vmem:[#allocation4 + $0x18] sm:$0xff]
      %v1018 = vld [vmem:[#allocation4 + $0x20] sm:$0xff]
      %v1019 = vld [vmem:[#allocation4 + $0x28] sm:$0xff]
      %v1020 = vld [vmem:[#allocation4 + $0x30] sm:$0xff]
      %v1021 = vld [vmem:[#allocation4 + $0x38] sm:$0xff]
      %v1022 = vld [vmem:[#allocation4 + $0x40] sm:$0xff]
      %v1023 = vld [vmem:[#allocation4 + $0x48] sm:$0xff]
      %v1024 = vld [vmem:[#allocation4 + $0x50] sm:$0xff]
      %v1025 = vld [vmem:[#allocation4 + $0x58] sm:$0xff]
      %v1026 = vld [vmem:[#allocation4 + $0x60] sm:$0xff]
      %v1027 = vld [vmem:[#allocation4 + $0x68] sm:$0xff]
      %v1028 = vld [vmem:[#allocation4 + $0x70] sm:$0xff]
      %v1029 = vld [vmem:[#allocation4 + $0x78] sm:$0xff]
      %1031 = vset.pattern.permute.xlu0 0
      %1032 = vperm.xlu0 %1031, %v758
      %v1033 = vpop.permute.xlu0 %1032
      %1036 = vset.pattern.permute.xlu0 0
      %1037 = vperm.xlu0 %1036, %v760
      %v1038 = vpop.permute.xlu0 %1037
      %1041 = vset.pattern.permute.xlu0 0
      %1042 = vperm.xlu0 %1041, %v762
      %v1043 = vpop.permute.xlu0 %1042
      %1046 = vset.pattern.permute.xlu0 0
      %1047 = vperm.xlu0 %1046, %v764
      %v1048 = vpop.permute.xlu0 %1047
      %1051 = vset.pattern.permute.xlu0 0
      %1052 = vperm.xlu0 %1051, %v766
      %v1053 = vpop.permute.xlu0 %1052
      %1056 = vset.pattern.permute.xlu0 0
      %1057 = vperm.xlu0 %1056, %v768
      %v1058 = vpop.permute.xlu0 %1057
      %1061 = vset.pattern.permute.xlu0 0
      %1062 = vperm.xlu0 %1061, %v770
      %v1063 = vpop.permute.xlu0 %1062
      %1066 = vset.pattern.permute.xlu0 0
      %1067 = vperm.xlu0 %1066, %v772
      %v1068 = vpop.permute.xlu0 %1067
      %1071 = vset.pattern.permute.xlu0 0
      %1072 = vperm.xlu0 %1071, %v774
      %v1073 = vpop.permute.xlu0 %1072
      %1076 = vset.pattern.permute.xlu0 0
      %1077 = vperm.xlu0 %1076, %v776
      %v1078 = vpop.permute.xlu0 %1077
      %1081 = vset.pattern.permute.xlu0 0
      %1082 = vperm.xlu0 %1081, %v778
      %v1083 = vpop.permute.xlu0 %1082
      %1086 = vset.pattern.permute.xlu0 0
      %1087 = vperm.xlu0 %1086, %v780
      %v1088 = vpop.permute.xlu0 %1087
      %1091 = vset.pattern.permute.xlu0 0
      %1092 = vperm.xlu0 %1091, %v782
      %v1093 = vpop.permute.xlu0 %1092
      %1096 = vset.pattern.permute.xlu0 0
      %1097 = vperm.xlu0 %1096, %v784
      %v1098 = vpop.permute.xlu0 %1097
      %1101 = vset.pattern.permute.xlu0 0
      %1102 = vperm.xlu0 %1101, %v786
      %v1103 = vpop.permute.xlu0 %1102
      %1106 = vset.pattern.permute.xlu0 0
      %1107 = vperm.xlu0 %1106, %v788
      %v1108 = vpop.permute.xlu0 %1107
      %v1110 = vmul.f32 %v1033, %v1014
      %v1111 = vmul.f32 %v1038, %v1015
      %v1112 = vmul.f32 %v1043, %v1016
      %v1113 = vmul.f32 %v1048, %v1017
      %v1114 = vmul.f32 %v1053, %v1018
      %v1115 = vmul.f32 %v1058, %v1019
      %v1116 = vmul.f32 %v1063, %v1020
      %v1117 = vmul.f32 %v1068, %v1021
      %v1118 = vmul.f32 %v1073, %v1022
      %v1119 = vmul.f32 %v1078, %v1023
      %v1120 = vmul.f32 %v1083, %v1024
      %v1121 = vmul.f32 %v1088, %v1025
      %v1122 = vmul.f32 %v1093, %v1026
      %v1123 = vmul.f32 %v1098, %v1027
      %v1124 = vmul.f32 %v1103, %v1028
      %v1125 = vmul.f32 %v1108, %v1029
      %v1126 = vpack.c.bf16 %v888, %v886
      %v1127 = vpack.c.bf16 %v892, %v890
      %v1128 = vpack.c.bf16 %v896, %v894
      %v1129 = vpack.c.bf16 %v900, %v898
      %v1130 = vpack.c.bf16 %v904, %v902
      %v1131 = vpack.c.bf16 %v908, %v906
      %v1132 = vpack.c.bf16 %v912, %v910
      %v1133 = vpack.c.bf16 %v916, %v914
      %v1150 = vunpack.c.l.b16 %v475
      %v1151 = vunpack.c.l.b16 %v476
      %v1152 = vunpack.c.l.b16 %v477
      %v1153 = vunpack.c.l.b16 %v478
      %v1154 = vunpack.c.l.b16 %v479
      %v1155 = vunpack.c.l.b16 %v480
      %v1156 = vunpack.c.l.b16 %v481
      %v1157 = vunpack.c.l.b16 %v482
      %v1158 = vunpack.c.l.b16 %v483
      %v1159 = vunpack.c.l.b16 %v484
      %v1160 = vunpack.c.l.b16 %v485
      %v1161 = vunpack.c.l.b16 %v486
      %v1162 = vunpack.c.l.b16 %v487
      %v1163 = vunpack.c.l.b16 %v488
      %v1164 = vunpack.c.l.b16 %v489
      %v1165 = vunpack.c.l.b16 %v490
      %v1166 = vpack.c.b16 %v1151, %v1150
      %v1167 = vpack.c.b16 %v1153, %v1152
      %v1168 = vpack.c.b16 %v1155, %v1154
      %v1169 = vpack.c.b16 %v1157, %v1156
      %v1170 = vpack.c.b16 %v1159, %v1158
      %v1171 = vpack.c.b16 %v1161, %v1160
      %v1172 = vpack.c.b16 %v1163, %v1162
      %v1173 = vpack.c.b16 %v1165, %v1164
      %1182 = vmatprep.subr.bf16.mxu0 0
      %1183 = vmatpush1.bf16.msra.mxu0 %v1173
      %1184 = vmatprep.subr.bf16.mxu0 0
      %1185 = vmatpush1.bf16.msra.mxu0 %v1172
      %1186 = vmatprep.subr.bf16.mxu0 0
      %1187 = vmatpush1.bf16.msra.mxu0 %v1171
      %1188 = vmatprep.subr.bf16.mxu0 0
      %1189 = vmatpush1.bf16.msra.mxu0 %v1170
      %1190 = vmatprep.subr.bf16.mxu0 0
      %1191 = vmatpush1.bf16.msra.mxu0 %v1169
      %1192 = vmatprep.subr.bf16.mxu0 0
      %1193 = vmatpush1.bf16.msra.mxu0 %v1168
      %1194 = vmatprep.subr.bf16.mxu0 0
      %1195 = vmatpush1.bf16.msra.mxu0 %v1167
      %1196 = vmatprep.subr.bf16.mxu0 0
      %1197 = vmatpush1.bf16.msra.mxu0 %v1166
      %1198 = vmatprep.subr.bf16.mxu0 0
      %1199 = vmatpush2.bf16.msra.mxu0 0
      %1200 = vmatprep.subr.bf16.mxu0 0
      %1201 = vmatpush2.bf16.msra.mxu0 0
      %1202 = vmatprep.subr.bf16.mxu0 0
      %1203 = vmatpush2.bf16.msra.mxu0 0
      %1204 = vmatprep.subr.bf16.mxu0 0
      %1205 = vmatpush2.bf16.msra.mxu0 0
      %1206 = vmatprep.subr.bf16.mxu0 0
      %1207 = vmatpush2.bf16.msra.mxu0 0
      %1208 = vmatprep.subr.bf16.mxu0 0
      %1209 = vmatpush2.bf16.msra.mxu0 0
      %1210 = vmatprep.subr.bf16.mxu0 0
      %1211 = vmatpush2.bf16.msra.mxu0 0
      %1212 = vmatprep.subr.bf16.mxu0 0
      %1213 = vmatpush2.bf16.msra.mxu0 0
      %1214 = vmatprep.mubr.bf16.mxu0 0
      %1215 = vmatmul.mubr.bf16.gmra.mxu0 %v1126
      %v1216 = vpop.f32.mrf.mxu0
      %v1217 = vadd.f32 0.0, %v1216
      %v1218 = vpop.f32.mrf.mxu0
      %v1219 = vpop.f32.mrf.mxu0
      %v1220 = vadd.f32 0.0, %v1219
      %v1221 = vpop.f32.mrf.mxu0
      %1222 = vmatprep.mubr.bf16.mxu0 0
      %1223 = vmatmul.mubr.bf16.gmra.mxu0 %v1127
      %v1224 = vpop.f32.mrf.mxu0
      %v1225 = vadd.f32 0.0, %v1224
      %v1226 = vpop.f32.mrf.mxu0
      %v1227 = vpop.f32.mrf.mxu0
      %v1228 = vadd.f32 0.0, %v1227
      %v1229 = vpop.f32.mrf.mxu0
      %1230 = vmatprep.mubr.bf16.mxu0 0
      %1231 = vmatmul.mubr.bf16.gmra.mxu0 %v1128
      %v1232 = vpop.f32.mrf.mxu0
      %v1233 = vadd.f32 0.0, %v1232
      %v1234 = vpop.f32.mrf.mxu0
      %v1235 = vpop.f32.mrf.mxu0
      %v1236 = vadd.f32 0.0, %v1235
      %v1237 = vpop.f32.mrf.mxu0
      %1238 = vmatprep.mubr.bf16.mxu0 0
      %1239 = vmatmul.mubr.bf16.gmra.mxu0 %v1129
      %v1240 = vpop.f32.mrf.mxu0
      %v1241 = vadd.f32 0.0, %v1240
      %v1242 = vpop.f32.mrf.mxu0
      %v1243 = vpop.f32.mrf.mxu0
      %v1244 = vadd.f32 0.0, %v1243
      %v1245 = vpop.f32.mrf.mxu0
      %1246 = vmatprep.mubr.bf16.mxu0 0
      %1247 = vmatmul.mubr.bf16.gmra.mxu0 %v1130
      %v1248 = vpop.f32.mrf.mxu0
      %v1249 = vadd.f32 0.0, %v1248
      %v1250 = vpop.f32.mrf.mxu0
      %v1251 = vpop.f32.mrf.mxu0
      %v1252 = vadd.f32 0.0, %v1251
      %v1253 = vpop.f32.mrf.mxu0
      %1254 = vmatprep.mubr.bf16.mxu0 0
      %1255 = vmatmul.mubr.bf16.gmra.mxu0 %v1131
      %v1256 = vpop.f32.mrf.mxu0
      %v1257 = vadd.f32 0.0, %v1256
      %v1258 = vpop.f32.mrf.mxu0
      %v1259 = vpop.f32.mrf.mxu0
      %v1260 = vadd.f32 0.0, %v1259
      %v1261 = vpop.f32.mrf.mxu0
      %1262 = vmatprep.mubr.bf16.mxu0 0
      %1263 = vmatmul.mubr.bf16.gmra.mxu0 %v1132
      %v1264 = vpop.f32.mrf.mxu0
      %v1265 = vadd.f32 0.0, %v1264
      %v1266 = vpop.f32.mrf.mxu0
      %v1267 = vpop.f32.mrf.mxu0
      %v1268 = vadd.f32 0.0, %v1267
      %v1269 = vpop.f32.mrf.mxu0
      %1270 = vmatprep.mubr.bf16.mxu0 0
      %1271 = vmatmul.mubr.bf16.gmra.mxu0 %v1133
      %v1272 = vpop.f32.mrf.mxu0
      %v1273 = vadd.f32 0.0, %v1272
      %v1274 = vpop.f32.mrf.mxu0
      %v1275 = vpop.f32.mrf.mxu0
      %v1276 = vadd.f32 0.0, %v1275
      %v1277 = vpop.f32.mrf.mxu0
      %1278 = vdwg.mxu0
      %v1279 = vadd.f32 %v1110, %v1217
      %v1280 = vadd.f32 %v1111, %v1220
      %v1281 = vadd.f32 %v1112, %v1225
      %v1282 = vadd.f32 %v1113, %v1228
      %v1283 = vadd.f32 %v1114, %v1233
      %v1284 = vadd.f32 %v1115, %v1236
      %v1285 = vadd.f32 %v1116, %v1241
      %v1286 = vadd.f32 %v1117, %v1244
      %v1287 = vadd.f32 %v1118, %v1249
      %v1288 = vadd.f32 %v1119, %v1252
      %v1289 = vadd.f32 %v1120, %v1257
      %v1290 = vadd.f32 %v1121, %v1260
      %v1291 = vadd.f32 %v1122, %v1265
      %v1292 = vadd.f32 %v1123, %v1268
      %v1293 = vadd.f32 %v1124, %v1273
      %v1294 = vadd.f32 %v1125, %v1276
      %1295 = vst.msk [vmem:[#allocation4] sm:$0xff] %vm531, %v1279
      %1296 = vst.msk [vmem:[#allocation4 + $0x8] sm:$0xff] %vm531, %v1280
      %1297 = vst.msk [vmem:[#allocation4 + $0x10] sm:$0xff] %vm531, %v1281
      %1298 = vst.msk [vmem:[#allocation4 + $0x18] sm:$0xff] %vm531, %v1282
      %1299 = vst.msk [vmem:[#allocation4 + $0x20] sm:$0xff] %vm531, %v1283
      %1300 = vst.msk [vmem:[#allocation4 + $0x28] sm:$0xff] %vm531, %v1284
      %1301 = vst.msk [vmem:[#allocation4 + $0x30] sm:$0xff] %vm531, %v1285
      %1302 = vst.msk [vmem:[#allocation4 + $0x38] sm:$0xff] %vm531, %v1286
      %1303 = vst.msk [vmem:[#allocation4 + $0x40] sm:$0xff] %vm531, %v1287
      %1304 = vst.msk [vmem:[#allocation4 + $0x48] sm:$0xff] %vm531, %v1288
      %1305 = vst.msk [vmem:[#allocation4 + $0x50] sm:$0xff] %vm531, %v1289
      %1306 = vst.msk [vmem:[#allocation4 + $0x58] sm:$0xff] %vm531, %v1290
      %1307 = vst.msk [vmem:[#allocation4 + $0x60] sm:$0xff] %vm531, %v1291
      %1308 = vst.msk [vmem:[#allocation4 + $0x68] sm:$0xff] %vm531, %v1292
      %1309 = vst.msk [vmem:[#allocation4 + $0x70] sm:$0xff] %vm531, %v1293
      %1310 = vst.msk [vmem:[#allocation4 + $0x78] sm:$0xff] %vm531, %v1294
      %1311 = vst.msk [vmem:[#allocation2] sm:$0xff] %vm997, %v725
      %1312 = vst.msk [vmem:[#allocation2 + $0x8] sm:$0xff] %vm997, %v726
      %1313 = vst.msk [vmem:[#allocation2 + $0x10] sm:$0xff] %vm997, %v727
      %1314 = vst.msk [vmem:[#allocation2 + $0x18] sm:$0xff] %vm997, %v728
      %1315 = vst.msk [vmem:[#allocation2 + $0x20] sm:$0xff] %vm997, %v729
      %1316 = vst.msk [vmem:[#allocation2 + $0x28] sm:$0xff] %vm997, %v730
      %1317 = vst.msk [vmem:[#allocation2 + $0x30] sm:$0xff] %vm997, %v731
      %1318 = vst.msk [vmem:[#allocation2 + $0x38] sm:$0xff] %vm997, %v732
      %1319 = vst.msk [vmem:[#allocation2 + $0x40] sm:$0xff] %vm997, %v733
      %1320 = vst.msk [vmem:[#allocation2 + $0x48] sm:$0xff] %vm997, %v734
      %1321 = vst.msk [vmem:[#allocation2 + $0x50] sm:$0xff] %vm997, %v735
      %1322 = vst.msk [vmem:[#allocation2 + $0x58] sm:$0xff] %vm997, %v736
      %1323 = vst.msk [vmem:[#allocation2 + $0x60] sm:$0xff] %vm997, %v737
      %1324 = vst.msk [vmem:[#allocation2 + $0x68] sm:$0xff] %vm997, %v738
      %1325 = vst.msk [vmem:[#allocation2 + $0x70] sm:$0xff] %vm997, %v739
      %1326 = vst.msk [vmem:[#allocation2 + $0x78] sm:$0xff] %vm997, %v740
      // Predicated region
      $region37: #{tpu_custom_call.1} parent=31 // pred_check
        %p1327 = pneg %p349
      $region38: #{tpu_custom_call.1} parent=31 // pred_check_branch
        %1329 = sbr.rel (%p1327) target = $region40
      $region39: #{tpu_custom_call.1} parent=31 // pred_region
        %v1330 = vld [vmem:[#allocation3] sm:$0xff]
        %v1331 = vld [vmem:[#allocation3 + $0x8] sm:$0xff]
        %v1332 = vld [vmem:[#allocation3 + $0x10] sm:$0xff]
        %v1333 = vld [vmem:[#allocation3 + $0x18] sm:$0xff]
        %v1334 = vld [vmem:[#allocation3 + $0x20] sm:$0xff]
        %v1335 = vld [vmem:[#allocation3 + $0x28] sm:$0xff]
        %v1336 = vld [vmem:[#allocation3 + $0x30] sm:$0xff]
        %v1337 = vld [vmem:[#allocation3 + $0x38] sm:$0xff]
        %v1338 = vld [vmem:[#allocation3 + $0x40] sm:$0xff]
        %v1339 = vld [vmem:[#allocation3 + $0x48] sm:$0xff]
        %v1340 = vld [vmem:[#allocation3 + $0x50] sm:$0xff]
        %v1341 = vld [vmem:[#allocation3 + $0x58] sm:$0xff]
        %v1342 = vld [vmem:[#allocation3 + $0x60] sm:$0xff]
        %v1343 = vld [vmem:[#allocation3 + $0x68] sm:$0xff]
        %v1344 = vld [vmem:[#allocation3 + $0x70] sm:$0xff]
        %v1345 = vld [vmem:[#allocation3 + $0x78] sm:$0xff]
        %v1346 = vrcp.pop %v1330
        %v1347 = vrcp.pop %v1331
        %v1348 = vrcp.pop %v1332
        %v1349 = vrcp.pop %v1333
        %v1350 = vrcp.pop %v1334
        %v1351 = vrcp.pop %v1335
        %v1352 = vrcp.pop %v1336
        %v1353 = vrcp.pop %v1337
        %v1354 = vrcp.pop %v1338
        %v1355 = vrcp.pop %v1339
        %v1356 = vrcp.pop %v1340
        %v1357 = vrcp.pop %v1341
        %v1358 = vrcp.pop %v1342
        %v1359 = vrcp.pop %v1343
        %v1360 = vrcp.pop %v1344
        %v1361 = vrcp.pop %v1345
        %v1362 = vld [vmem:[#allocation4] sm:$0xff]
        %v1363 = vld [vmem:[#allocation4 + $0x8] sm:$0xff]
        %v1364 = vld [vmem:[#allocation4 + $0x10] sm:$0xff]
        %v1365 = vld [vmem:[#allocation4 + $0x18] sm:$0xff]
        %v1366 = vld [vmem:[#allocation4 + $0x20] sm:$0xff]
        %v1367 = vld [vmem:[#allocation4 + $0x28] sm:$0xff]
        %v1368 = vld [vmem:[#allocation4 + $0x30] sm:$0xff]
        %v1369 = vld [vmem:[#allocation4 + $0x38] sm:$0xff]
        %v1370 = vld [vmem:[#allocation4 + $0x40] sm:$0xff]
        %v1371 = vld [vmem:[#allocation4 + $0x48] sm:$0xff]
        %v1372 = vld [vmem:[#allocation4 + $0x50] sm:$0xff]
        %v1373 = vld [vmem:[#allocation4 + $0x58] sm:$0xff]
        %v1374 = vld [vmem:[#allocation4 + $0x60] sm:$0xff]
        %v1375 = vld [vmem:[#allocation4 + $0x68] sm:$0xff]
        %v1376 = vld [vmem:[#allocation4 + $0x70] sm:$0xff]
        %v1377 = vld [vmem:[#allocation4 + $0x78] sm:$0xff]
        %1379 = vset.pattern.permute.xlu0 0
        %1380 = vperm.xlu0 %1379, %v1346
        %v1381 = vpop.permute.xlu0 %1380
        %1384 = vset.pattern.permute.xlu0 0
        %1385 = vperm.xlu0 %1384, %v1347
        %v1386 = vpop.permute.xlu0 %1385
        %1389 = vset.pattern.permute.xlu0 0
        %1390 = vperm.xlu0 %1389, %v1348
        %v1391 = vpop.permute.xlu0 %1390
        %1394 = vset.pattern.permute.xlu0 0
        %1395 = vperm.xlu0 %1394, %v1349
        %v1396 = vpop.permute.xlu0 %1395
        %1399 = vset.pattern.permute.xlu0 0
        %1400 = vperm.xlu0 %1399, %v1350
        %v1401 = vpop.permute.xlu0 %1400
        %1404 = vset.pattern.permute.xlu0 0
        %1405 = vperm.xlu0 %1404, %v1351
        %v1406 = vpop.permute.xlu0 %1405
        %1409 = vset.pattern.permute.xlu0 0
        %1410 = vperm.xlu0 %1409, %v1352
        %v1411 = vpop.permute.xlu0 %1410
        %1414 = vset.pattern.permute.xlu0 0
        %1415 = vperm.xlu0 %1414, %v1353
        %v1416 = vpop.permute.xlu0 %1415
        %1419 = vset.pattern.permute.xlu0 0
        %1420 = vperm.xlu0 %1419, %v1354
        %v1421 = vpop.permute.xlu0 %1420
        %1424 = vset.pattern.permute.xlu0 0
        %1425 = vperm.xlu0 %1424, %v1355
        %v1426 = vpop.permute.xlu0 %1425
        %1429 = vset.pattern.permute.xlu0 0
        %1430 = vperm.xlu0 %1429, %v1356
        %v1431 = vpop.permute.xlu0 %1430
        %1434 = vset.pattern.permute.xlu0 0
        %1435 = vperm.xlu0 %1434, %v1357
        %v1436 = vpop.permute.xlu0 %1435
        %1439 = vset.pattern.permute.xlu0 0
        %1440 = vperm.xlu0 %1439, %v1358
        %v1441 = vpop.permute.xlu0 %1440
        %1444 = vset.pattern.permute.xlu0 0
        %1445 = vperm.xlu0 %1444, %v1359
        %v1446 = vpop.permute.xlu0 %1445
        %1449 = vset.pattern.permute.xlu0 0
        %1450 = vperm.xlu0 %1449, %v1360
        %v1451 = vpop.permute.xlu0 %1450
        %1454 = vset.pattern.permute.xlu0 0
        %1455 = vperm.xlu0 %1454, %v1361
        %v1456 = vpop.permute.xlu0 %1455
        %v1458 = vmul.f32 %v1362, %v1381
        %v1459 = vmul.f32 %v1363, %v1386
        %v1460 = vmul.f32 %v1364, %v1391
        %v1461 = vmul.f32 %v1365, %v1396
        %v1462 = vmul.f32 %v1366, %v1401
        %v1463 = vmul.f32 %v1367, %v1406
        %v1464 = vmul.f32 %v1368, %v1411
        %v1465 = vmul.f32 %v1369, %v1416
        %v1466 = vmul.f32 %v1370, %v1421
        %v1467 = vmul.f32 %v1371, %v1426
        %v1468 = vmul.f32 %v1372, %v1431
        %v1469 = vmul.f32 %v1373, %v1436
        %v1470 = vmul.f32 %v1374, %v1441
        %v1471 = vmul.f32 %v1375, %v1446
        %v1472 = vmul.f32 %v1376, %v1451
        %v1473 = vmul.f32 %v1377, %v1456
        %v1474 = vpack.c.bf16 %v1459, %v1458
        %v1475 = vpack.c.bf16 %v1461, %v1460
        %v1476 = vpack.c.bf16 %v1463, %v1462
        %v1477 = vpack.c.bf16 %v1465, %v1464
        %v1478 = vpack.c.bf16 %v1467, %v1466
        %v1479 = vpack.c.bf16 %v1469, %v1468
        %v1480 = vpack.c.bf16 %v1471, %v1470
        %v1481 = vpack.c.bf16 %v1473, %v1472
        %v1490 = vunpack.c.l.b16 %v1474
        %v1491 = vunpack.c.h.b16 %v1474
        %v1492 = vunpack.c.l.b16 %v1475
        %v1493 = vunpack.c.h.b16 %v1475
        %v1494 = vunpack.c.l.b16 %v1476
        %v1495 = vunpack.c.h.b16 %v1476
        %v1496 = vunpack.c.l.b16 %v1477
        %v1497 = vunpack.c.h.b16 %v1477
        %v1498 = vunpack.c.l.b16 %v1478
        %v1499 = vunpack.c.h.b16 %v1478
        %v1500 = vunpack.c.l.b16 %v1479
        %v1501 = vunpack.c.h.b16 %v1479
        %v1502 = vunpack.c.l.b16 %v1480
        %v1503 = vunpack.c.h.b16 %v1480
        %v1504 = vunpack.c.l.b16 %v1481
        %v1505 = vunpack.c.h.b16 %v1481
        %v1506 = vpack.c.b16 %v1490, %v1490
        %v1507 = vpack.c.b16 %v1491, %v1491
        %v1508 = vpack.c.b16 %v1492, %v1492
        %v1509 = vpack.c.b16 %v1493, %v1493
        %v1510 = vpack.c.b16 %v1494, %v1494
        %v1511 = vpack.c.b16 %v1495, %v1495
        %v1512 = vpack.c.b16 %v1496, %v1496
        %v1513 = vpack.c.b16 %v1497, %v1497
        %v1514 = vpack.c.b16 %v1498, %v1498
        %v1515 = vpack.c.b16 %v1499, %v1499
        %v1516 = vpack.c.b16 %v1500, %v1500
        %v1517 = vpack.c.b16 %v1501, %v1501
        %v1518 = vpack.c.b16 %v1502, %v1502
        %v1519 = vpack.c.b16 %v1503, %v1503
        %v1520 = vpack.c.b16 %v1504, %v1504
        %v1521 = vpack.c.b16 %v1505, %v1505
        %vm1538 = vcmask 257024
        %1539 = vst.msk [vmem:[%s346] sm:$0xf] %vm1538, %v1506
        %1540 = vst.msk [vmem:[%s346 + $0x4] sm:$0xf] %vm1538, %v1507
        %1541 = vst.msk [vmem:[%s346 + $0x8] sm:$0xf] %vm1538, %v1508
        %1542 = vst.msk [vmem:[%s346 + $0xc] sm:$0xf] %vm1538, %v1509
        %1543 = vst.msk [vmem:[%s346 + $0x10] sm:$0xf] %vm1538, %v1510
        %1544 = vst.msk [vmem:[%s346 + $0x14] sm:$0xf] %vm1538, %v1511
        %1545 = vst.msk [vmem:[%s346 + $0x18] sm:$0xf] %vm1538, %v1512
        %1546 = vst.msk [vmem:[%s346 + $0x1c] sm:$0xf] %vm1538, %v1513
        %1547 = vst.msk [vmem:[%s346 + $0x20] sm:$0xf] %vm1538, %v1514
        %1548 = vst.msk [vmem:[%s346 + $0x24] sm:$0xf] %vm1538, %v1515
        %1549 = vst.msk [vmem:[%s346 + $0x28] sm:$0xf] %vm1538, %v1516
        %1550 = vst.msk [vmem:[%s346 + $0x2c] sm:$0xf] %vm1538, %v1517
        %1551 = vst.msk [vmem:[%s346 + $0x30] sm:$0xf] %vm1538, %v1518
        %1552 = vst.msk [vmem:[%s346 + $0x34] sm:$0xf] %vm1538, %v1519
        %1553 = vst.msk [vmem:[%s346 + $0x38] sm:$0xf] %vm1538, %v1520
        %1554 = vst.msk [vmem:[%s346 + $0x3c] sm:$0xf] %vm1538, %v1521
      $region40: #{tpu_custom_call.1} parent=31 // pred_fallthru
        _
      %s1555 = smul.u32 16, %s22
      %p1556 = scmp.lt.s32.totalorder %s20, 1
      %s1557 = scalar_select %p1556, %s20, 1
      %p1558 = scmp.lt.s32.totalorder %s21, 3
      %s1559 = scalar_select %p1558, %s21, 3
      %p1560 = scmp.lt.s32.totalorder %s1555, 15
      %s1561 = scalar_select %p1560, %s1555, 15
      %s1562 = smul.addr %s1559, 16
      %s1563 = sadd.s32 %s1561, %s1562
      %s1564 = smul.addr %s1557, 64
      %s1565 = sadd.s32 %s1563, %s1564
      %s1566 = smul.addr %s1565, 4
      %s1567 = scalar_lea.vmem %s3, %s1566
      // Predicated region
      $region41: #{tpu_custom_call.1} parent=31 // pred_check
        %p1568 = pneg %p152
      $region42: #{tpu_custom_call.1} parent=31 // pred_check_branch
        %1570 = sbr.rel (%p1568) target = $region44
      $region43: #{tpu_custom_call.1} parent=31 // pred_region
        %s1571 = smul.u32 16, %s22
      $region44: #{tpu_custom_call.1} parent=31 // pred_fallthru
        _
    $region32: #{tpu_custom_call.1} parent=5 // pred_fallthru
      _
    %p1572 = scmp.le.s32.totalorder 2, %s9
    // Predicated region
    $region45: #{tpu_custom_call.1} parent=5 // pred_check
      %p1573 = pneg %p1572
    $region46: #{tpu_custom_call.1} parent=5 // pred_check_branch
      %1575 = sbr.rel (%p1573) target = $region48
    $region47: #{tpu_custom_call.1} parent=5 // pred_region
      %s1576 = ssub.s32 %s9, 2
      // Predicated region
      $region49: #{tpu_custom_call.1} parent=47 // pred_check
        %p1577 = pneg %p158
      $region50: #{tpu_custom_call.1} parent=47 // pred_check_branch
        %1579 = sbr.rel (%p1577) target = $region52
      $region51: #{tpu_custom_call.1} parent=47 // pred_region
        %s1580 = smul.u32 16, %s26
        %p1581 = scmp.lt.s32.totalorder %s24, 1
        %s1582 = scalar_select %p1581, %s24, 1
        %p1583 = scmp.lt.s32.totalorder %s25, 3
        %s1584 = scalar_select %p1583, %s25, 3
        %p1585 = scmp.lt.s32.totalorder %s1580, 15
        %s1586 = scalar_select %p1585, %s1580, 15
        %s1587 = smul.addr %s1584, 16
        %s1588 = sadd.s32 %s1586, %s1587
        %s1589 = smul.addr %s1582, 64
        %s1590 = sadd.s32 %s1588, %s1589
        %s1591 = smul.addr %s1590, 4
        %s1592 = scalar_lea.vmem %s3, %s1591
      $region52: #{tpu_custom_call.1} parent=47 // pred_fallthru
        _
    $region48: #{tpu_custom_call.1} parent=5 // pred_fallthru
      _
  $region6: #{tpu_custom_call.1} parent=0 // loop_footer
    %s13 = sadd.s32 1, %s9
  $region7: #{tpu_custom_call.1} parent=0 // loop_footer_branch
    %8 = sbr.rel target = $region3
  $region8: #{tpu_custom_call.1} parent=0 // loop_exit
    _

</llo_original>
